<compile_context>
chip_gen: v5e
topology: v5e:2x2
jax: 0.10.0
libtpu: 0.0.40
codegen_flags: <defaults>
</compile_context>

<pallas_src>
import functools

import jax
import jax.numpy as jnp
from jax.experimental import pallas as pl
from jax.experimental.pallas import tpu as pltpu

IN_FEATURES = 32 * 32 * 3  # 3072
OUT_LANES = 128            # lane-dense padded output width (true output is col 0)


def _round_up(x, m):
    return ((x + m - 1) // m) * m


def _disc_kernel(x_ref,
                 w1_ref, b1_ref,
                 w2_ref, b2_ref,
                 w3_ref, b3_ref,
                 w4_ref, b4_ref,
                 o_ref):
    """Whole-network forward for one batch tile; weights resident in VMEM."""
    slope = jnp.float32(0.2)

    def leaky_relu(h):
        return jnp.where(h > 0, h, slope * h)

    x = x_ref[...]                                                        # [BM, 3072] bf16

    # Layer 1: 3072 -> 4H
    h = jnp.dot(x, w1_ref[...], preferred_element_type=jnp.float32)      # [BM, 4H] f32
    h = leaky_relu(h + b1_ref[...])
    # Dropout(0.3): identity at inference.

    # Layer 2: 4H -> 2H
    h = jnp.dot(h.astype(jnp.bfloat16), w2_ref[...],
                preferred_element_type=jnp.float32)                      # [BM, 2H]
    h = leaky_relu(h + b2_ref[...])

    # Layer 3: 2H -> H
    h = jnp.dot(h.astype(jnp.bfloat16), w3_ref[...],
                preferred_element_type=jnp.float32)                      # [BM, H]
    h = leaky_relu(h + b3_ref[...])

    # Layer 4: H -> 1 (padded to OUT_LANES lanes for a dense store)
    logit = jnp.dot(h.astype(jnp.bfloat16), w4_ref[...],
                    preferred_element_type=jnp.float32)                  # [BM, 128]
    o_ref[...] = jax.nn.sigmoid(logit + b4_ref[...])


@functools.partial(jax.jit, static_argnames=("block_m",))
def interesting_gan_discriminator(x_nchw, params, *, block_m=128):
    """x_nchw: [B, 3, 32, 32] float32. Returns [B, 1] probabilities."""
    B = x_nchw.shape[0]
    x_flat = x_nchw.reshape(B, IN_FEATURES)  # same semantics as x.view(-1, 3072)

    (w1, b1), (w2, b2), (w3, b3), (w4, b4) = params
    H4 = w1.shape[1]
    H2 = w2.shape[1]
    H = w3.shape[1]

    # Batch tile: at least 8 rows (sublane alignment), up to block_m.
    BM = block_m if B >= block_m else _round_up(B, 8)
    B_pad = _round_up(B, BM)
    grid = (B_pad // BM,)

    # bf16 weights / activations, f32 biases and accumulation.
    x_p = jnp.zeros((B_pad, IN_FEATURES), jnp.bfloat16).at[:B].set(
        x_flat.astype(jnp.bfloat16))
    w1b = w1.astype(jnp.bfloat16)
    w2b = w2.astype(jnp.bfloat16)
    w3b = w3.astype(jnp.bfloat16)
    # Pad final layer to OUT_LANES lanes (extra columns are zero -> sliced away).
    w4b = jnp.pad(w4, ((0, 0), (0, OUT_LANES - w4.shape[1]))).astype(jnp.bfloat16)
    b4p = jnp.pad(b4.reshape(1, -1), ((0, 0), (0, OUT_LANES - b4.shape[0])))

    b1r = b1.reshape(1, -1).astype(jnp.float32)
    b2r = b2.reshape(1, -1).astype(jnp.float32)
    b3r = b3.reshape(1, -1).astype(jnp.float32)
    b4r = b4p.astype(jnp.float32)

    in_specs = [
        pl.BlockSpec((BM, IN_FEATURES), lambda i: (i, 0)),   # x: batch-tiled
        pl.BlockSpec((IN_FEATURES, H4), lambda i: (0, 0)),   # weights: resident
        pl.BlockSpec((1, H4), lambda i: (0, 0)),
        pl.BlockSpec((H4, H2), lambda i: (0, 0)),
        pl.BlockSpec((1, H2), lambda i: (0, 0)),
        pl.BlockSpec((H2, H), lambda i: (0, 0)),
        pl.BlockSpec((1, H), lambda i: (0, 0)),
        pl.BlockSpec((H, OUT_LANES), lambda i: (0, 0)),
        pl.BlockSpec((1, OUT_LANES), lambda i: (0, 0)),
    ]
    out_specs = pl.BlockSpec((BM, OUT_LANES), lambda i: (i, 0))

    # Rough VMEM budget: double-buffered x/out tiles + resident bf16 weights.
    weight_bytes = 2 * (IN_FEATURES * H4 + H4 * H2 + H2 * H + H * OUT_LANES)
    bias_bytes = 4 * (H4 + H2 + H + OUT_LANES)
    tile_bytes = 2 * (BM * IN_FEATURES * 2) + 2 * (BM * OUT_LANES * 4)
    vmem_limit = min(max(2 * (weight_bytes + bias_bytes + tile_bytes), 16 << 20),
                     48 << 20)

    flops = 2 * B_pad * (IN_FEATURES * H4 + H4 * H2 + H2 * H + H * OUT_LANES)
    bytes_accessed = (x_p.size * 2 + weight_bytes + bias_bytes
                      + B_pad * OUT_LANES * 4)
    cost = pl.CostEstimate(flops=flops,
                           transcendentals=B_pad * OUT_LANES,
                           bytes_accessed=bytes_accessed)

    out_full = pl.pallas_call(
        _disc_kernel,
        out_shape=jax.ShapeDtypeStruct((B_pad, OUT_LANES), jnp.float32),
        grid=grid,
        in_specs=in_specs,
        out_specs=out_specs,
        compiler_params=pltpu.CompilerParams(
            dimension_semantics=("parallel",),
            vmem_limit_bytes=int(vmem_limit)),
        cost_estimate=cost,
    )(x_p, w1b, b1r, w2b, b2r, w3b, b3r, w4b, b4r)

    return out_full[:B, :1]


def init_params(key, hidden_dim=64, in_features=IN_FEATURES):
    """Deterministic synthetic init (PyTorch-style uniform). Weights [in, out]."""
    dims = [in_features, hidden_dim * 4, hidden_dim * 2, hidden_dim, 1]
    params = []
    for i in range(4):
        key, kw, kb = jax.random.split(key, 3)
        fan_in = dims[i]
        bound = 1.0 / jnp.sqrt(fan_in)
        w = jax.random.uniform(kw, (dims[i], dims[i + 1]),
                               minval=-bound, maxval=bound, dtype=jnp.float32)
        b = jax.random.uniform(kb, (dims[i + 1],),
                               minval=-bound, maxval=bound, dtype=jnp.float32)
        params.append((w, b))
    return params


if __name__ == "__main__":
    key = jax.random.PRNGKey(0)
    k_x, k_p = jax.random.split(key)

    # Small but shape-consistent example: batch=2, fixed 3x32x32 input images,
    # hidden_dim=64 (constructor parameter; module default is 256).
    B = 2
    hidden_dim = 64
    x = jax.random.normal(k_x, (B, 3, 32, 32), dtype=jnp.float32)
    params = init_params(k_p, hidden_dim=hidden_dim)

    out = interesting_gan_discriminator(x, params)
    out = jax.block_until_ready(out)

    assert out.shape == (B, 1)
    assert bool(jnp.all((out >= 0.0) & (out <= 1.0)))

    # Reference check in plain f32 JAX (kernel uses bf16 weights/activations
    # with f32 accumulation, so tolerance is loosened accordingly).
    def ref_forward(x_nchw, params):
        h = x_nchw.reshape(x_nchw.shape[0], -1)
        for i, (w, b) in enumerate(params):
            h = h @ w + b
            if i < 3:
                h = jnp.where(h > 0, h, 0.2 * h)
        return jax.nn.sigmoid(h)

    ref = ref_forward(x, params)
    assert jnp.allclose(out, ref, atol=2e-2, rtol=2e-2), (out, ref)

    print("KERNEL_OK")
</pallas_src>

<mosaic_0001>
module attributes {stable_mosaic.version = 11 : i64} {
  func.func @_disc_kernel(%arg0: i32, %arg1: memref<8x3072xbf16, #tpu.memory_space<vmem>>, %arg2: memref<3072x256xbf16, #tpu.memory_space<vmem>>, %arg3: memref<1x256xf32, #tpu.memory_space<vmem>>, %arg4: memref<256x128xbf16, #tpu.memory_space<vmem>>, %arg5: memref<1x128xf32, #tpu.memory_space<vmem>>, %arg6: memref<128x64xbf16, #tpu.memory_space<vmem>>, %arg7: memref<1x64xf32, #tpu.memory_space<vmem>>, %arg8: memref<64x128xbf16, #tpu.memory_space<vmem>>, %arg9: memref<1x128xf32, #tpu.memory_space<vmem>>, %arg10: memref<8x128xf32, #tpu.memory_space<vmem>>) attributes {dimension_semantics = [#tpu.dimension_semantics<parallel>], iteration_bounds = array<i64: 1>, scalar_prefetch = 0 : i64, scratch_operands = 0 : i64, tpu.core_type = #tpu.core_type<tc>, window_params = [{transform_indices = @transform_0, window_bounds = array<i64: 8, 3072>}, {pipeline_mode = #tpu.pipeline_mode<synchronous>, transform_indices = @transform_1, window_bounds = array<i64: 3072, 256>}, {pipeline_mode = #tpu.pipeline_mode<synchronous>, transform_indices = @transform_2, window_bounds = array<i64: 1, 256>}, {pipeline_mode = #tpu.pipeline_mode<synchronous>, transform_indices = @transform_3, window_bounds = array<i64: 256, 128>}, {pipeline_mode = #tpu.pipeline_mode<synchronous>, transform_indices = @transform_4, window_bounds = array<i64: 1, 128>}, {pipeline_mode = #tpu.pipeline_mode<synchronous>, transform_indices = @transform_5, window_bounds = array<i64: 128, 64>}, {pipeline_mode = #tpu.pipeline_mode<synchronous>, transform_indices = @transform_6, window_bounds = array<i64: 1, 64>}, {pipeline_mode = #tpu.pipeline_mode<synchronous>, transform_indices = @transform_7, window_bounds = array<i64: 64, 128>}, {pipeline_mode = #tpu.pipeline_mode<synchronous>, transform_indices = @transform_8, window_bounds = array<i64: 1, 128>}, {transform_indices = @transform_9, window_bounds = array<i64: 8, 128>}]} {
    %c0 = arith.constant 0 : index
    %c0_0 = arith.constant 0 : index
    %0 = vector.load %arg1[%c0, %c0_0] : memref<8x3072xbf16, #tpu.memory_space<vmem>>, vector<8x3072xbf16>
    %c0_1 = arith.constant 0 : index
    %c0_2 = arith.constant 0 : index
    %1 = vector.load %arg2[%c0_1, %c0_2] : memref<3072x256xbf16, #tpu.memory_space<vmem>>, vector<3072x256xbf16>
    %cst = arith.constant dense<0.000000e+00> : vector<8x256xf32>
    %2 = tpu.matmul %0, %1, %cst {dimension_numbers = #tpu.dot_dimension_numbers<[1], [0], [0], [1], [0, 0, 1, 1], [], []>} : vector<8x3072xbf16>, vector<3072x256xbf16>, vector<8x256xf32> -> vector<8x256xf32>
    %c0_3 = arith.constant 0 : index
    %c0_4 = arith.constant 0 : index
    %3 = vector.load %arg3[%c0_3, %c0_4] : memref<1x256xf32, #tpu.memory_space<vmem>>, vector<1x256xf32>
    %4 = vector.broadcast %3 : vector<1x256xf32> to vector<8x256xf32>
    %5 = arith.addf %2, %4 : vector<8x256xf32>
    %cst_5 = arith.constant 0.000000e+00 : f32
    %6 = vector.broadcast %cst_5 : f32 to vector<8x256xf32>
    %7 = arith.cmpf ogt, %5, %6 : vector<8x256xf32>
    %cst_6 = arith.constant 2.000000e-01 : f32
    %8 = vector.broadcast %cst_6 : f32 to vector<8x256xf32>
    %9 = arith.mulf %8, %5 : vector<8x256xf32>
    %10 = arith.select %7, %5, %9 : vector<8x256xi1>, vector<8x256xf32>
    %11 = arith.truncf %10 : vector<8x256xf32> to vector<8x256xbf16>
    %c0_7 = arith.constant 0 : index
    %c0_8 = arith.constant 0 : index
    %12 = vector.load %arg4[%c0_7, %c0_8] : memref<256x128xbf16, #tpu.memory_space<vmem>>, vector<256x128xbf16>
    %cst_9 = arith.constant dense<0.000000e+00> : vector<8x128xf32>
    %13 = tpu.matmul %11, %12, %cst_9 {dimension_numbers = #tpu.dot_dimension_numbers<[1], [0], [0], [1], [0, 0, 1, 1], [], []>} : vector<8x256xbf16>, vector<256x128xbf16>, vector<8x128xf32> -> vector<8x128xf32>
    %c0_10 = arith.constant 0 : index
    %c0_11 = arith.constant 0 : index
    %14 = vector.load %arg5[%c0_10, %c0_11] : memref<1x128xf32, #tpu.memory_space<vmem>>, vector<1x128xf32>
    %15 = vector.broadcast %14 : vector<1x128xf32> to vector<8x128xf32>
    %16 = arith.addf %13, %15 : vector<8x128xf32>
    %cst_12 = arith.constant 0.000000e+00 : f32
    %17 = vector.broadcast %cst_12 : f32 to vector<8x128xf32>
    %18 = arith.cmpf ogt, %16, %17 : vector<8x128xf32>
    %cst_13 = arith.constant 2.000000e-01 : f32
    %19 = vector.broadcast %cst_13 : f32 to vector<8x128xf32>
    %20 = arith.mulf %19, %16 : vector<8x128xf32>
    %21 = arith.select %18, %16, %20 : vector<8x128xi1>, vector<8x128xf32>
    %22 = arith.truncf %21 : vector<8x128xf32> to vector<8x128xbf16>
    %c0_14 = arith.constant 0 : index
    %c0_15 = arith.constant 0 : index
    %23 = vector.load %arg6[%c0_14, %c0_15] : memref<128x64xbf16, #tpu.memory_space<vmem>>, vector<128x64xbf16>
    %cst_16 = arith.constant dense<0.000000e+00> : vector<8x64xf32>
    %24 = tpu.matmul %22, %23, %cst_16 {dimension_numbers = #tpu.dot_dimension_numbers<[1], [0], [0], [1], [0, 0, 1, 1], [], []>} : vector<8x128xbf16>, vector<128x64xbf16>, vector<8x64xf32> -> vector<8x64xf32>
    %c0_17 = arith.constant 0 : index
    %c0_18 = arith.constant 0 : index
    %25 = vector.load %arg7[%c0_17, %c0_18] : memref<1x64xf32, #tpu.memory_space<vmem>>, vector<1x64xf32>
    %26 = vector.broadcast %25 : vector<1x64xf32> to vector<8x64xf32>
    %27 = arith.addf %24, %26 : vector<8x64xf32>
    %cst_19 = arith.constant 0.000000e+00 : f32
    %28 = vector.broadcast %cst_19 : f32 to vector<8x64xf32>
    %29 = arith.cmpf ogt, %27, %28 : vector<8x64xf32>
    %cst_20 = arith.constant 2.000000e-01 : f32
    %30 = vector.broadcast %cst_20 : f32 to vector<8x64xf32>
    %31 = arith.mulf %30, %27 : vector<8x64xf32>
    %32 = arith.select %29, %27, %31 : vector<8x64xi1>, vector<8x64xf32>
    %33 = arith.truncf %32 : vector<8x64xf32> to vector<8x64xbf16>
    %c0_21 = arith.constant 0 : index
    %c0_22 = arith.constant 0 : index
    %34 = vector.load %arg8[%c0_21, %c0_22] : memref<64x128xbf16, #tpu.memory_space<vmem>>, vector<64x128xbf16>
    %cst_23 = arith.constant dense<0.000000e+00> : vector<8x128xf32>
    %35 = tpu.matmul %33, %34, %cst_23 {dimension_numbers = #tpu.dot_dimension_numbers<[1], [0], [0], [1], [0, 0, 1, 1], [], []>} : vector<8x64xbf16>, vector<64x128xbf16>, vector<8x128xf32> -> vector<8x128xf32>
    %c0_24 = arith.constant 0 : index
    %c0_25 = arith.constant 0 : index
    %36 = vector.load %arg9[%c0_24, %c0_25] : memref<1x128xf32, #tpu.memory_space<vmem>>, vector<1x128xf32>
    %37 = vector.broadcast %36 : vector<1x128xf32> to vector<8x128xf32>
    %38 = arith.addf %35, %37 : vector<8x128xf32>
    %39 = arith.negf %38 : vector<8x128xf32>
    %40 = math.exp %39 : vector<8x128xf32>
    %cst_26 = arith.constant 1.000000e+00 : f32
    %41 = vector.broadcast %cst_26 : f32 to vector<8x128xf32>
    %42 = arith.addf %41, %40 : vector<8x128xf32>
    %43 = arith.divf %41, %42 : vector<8x128xf32>
    %c0_27 = arith.constant 0 : index
    %c0_28 = arith.constant 0 : index
    %44 = vector.load %arg10[%c0_27, %c0_28] : memref<8x128xf32, #tpu.memory_space<vmem>>, vector<8x128xf32>
    tpu.vector_store %arg10[%c0_27, %c0_28], %43 {strides = array<i32>} : memref<8x128xf32, #tpu.memory_space<vmem>>, vector<8x128xf32>,
    return
  }
  func.func @transform_0(%arg0: i32) -> (i32, i32) {
    %c0_i32 = arith.constant 0 : i32
    %c0_i32_0 = arith.constant 0 : i32
    return %arg0, %c0_i32 : i32, i32
  }
  func.func @transform_1(%arg0: i32) -> (i32, i32) {
    %c0_i32 = arith.constant 0 : i32
    %c0_i32_0 = arith.constant 0 : i32
    %c0_i32_1 = arith.constant 0 : i32
    return %c0_i32, %c0_i32_0 : i32, i32
  }
  func.func @transform_2(%arg0: i32) -> (i32, i32) {
    %c0_i32 = arith.constant 0 : i32
    %c0_i32_0 = arith.constant 0 : i32
    %c0_i32_1 = arith.constant 0 : i32
    return %c0_i32, %c0_i32_0 : i32, i32
  }
  func.func @transform_3(%arg0: i32) -> (i32, i32) {
    %c0_i32 = arith.constant 0 : i32
    %c0_i32_0 = arith.constant 0 : i32
    %c0_i32_1 = arith.constant 0 : i32
    return %c0_i32, %c0_i32_0 : i32, i32
  }
  func.func @transform_4(%arg0: i32) -> (i32, i32) {
    %c0_i32 = arith.constant 0 : i32
    %c0_i32_0 = arith.constant 0 : i32
    %c0_i32_1 = arith.constant 0 : i32
    return %c0_i32, %c0_i32_0 : i32, i32
  }
  func.func @transform_5(%arg0: i32) -> (i32, i32) {
    %c0_i32 = arith.constant 0 : i32
    %c0_i32_0 = arith.constant 0 : i32
    %c0_i32_1 = arith.constant 0 : i32
    return %c0_i32, %c0_i32_0 : i32, i32
  }
  func.func @transform_6(%arg0: i32) -> (i32, i32) {
    %c0_i32 = arith.constant 0 : i32
    %c0_i32_0 = arith.constant 0 : i32
    %c0_i32_1 = arith.constant 0 : i32
    return %c0_i32, %c0_i32_0 : i32, i32
  }
  func.func @transform_7(%arg0: i32) -> (i32, i32) {
    %c0_i32 = arith.constant 0 : i32
    %c0_i32_0 = arith.constant 0 : i32
    %c0_i32_1 = arith.constant 0 : i32
    return %c0_i32, %c0_i32_0 : i32, i32
  }
  func.func @transform_8(%arg0: i32) -> (i32, i32) {
    %c0_i32 = arith.constant 0 : i32
    %c0_i32_0 = arith.constant 0 : i32
    %c0_i32_1 = arith.constant 0 : i32
    return %c0_i32, %c0_i32_0 : i32, i32
  }
  func.func @transform_9(%arg0: i32) -> (i32, i32) {
    %c0_i32 = arith.constant 0 : i32
    %c0_i32_0 = arith.constant 0 : i32
    return %arg0, %c0_i32 : i32, i32
  }
}

</mosaic_0001>

<llo_original>
// kernel: interesting_gan_discriminator.1
$region0: #{interesting_gan_discriminator.1}
  #allocation0 [shape = 'u32[]', space=smem, size = 0x4, offset = 0x4, fixed_abs, tag = 'smem constant byte address 0x4 - core index']
  #allocation1 [shape = 'u32[72,128]{1,0:T(1,128)}', space=vmem, size = 0x9000, scoped, tag = 'internal scratch']
  %s0 = inlined_call_operand.vmem [shape: bf16[8,3072], index: 0, kind: input, shape index: {}]
  %s1 = inlined_call_operand.vmem [shape: bf16[3072,256], index: 1, kind: input, shape index: {}]
  %s2 = inlined_call_operand.vmem [shape: f32[1,256], index: 2, kind: input, shape index: {}]
  %s3 = inlined_call_operand.vmem [shape: bf16[256,128], index: 3, kind: input, shape index: {}]
  %s4 = inlined_call_operand.vmem [shape: f32[1,128], index: 4, kind: input, shape index: {}]
  %s5 = inlined_call_operand.vmem [shape: bf16[128,64], index: 5, kind: input, shape index: {}]
  %s6 = inlined_call_operand.vmem [shape: f32[1,64], index: 6, kind: input, shape index: {}]
  %s7 = inlined_call_operand.vmem [shape: bf16[64,128], index: 7, kind: input, shape index: {}]
  %s8 = inlined_call_operand.vmem [shape: f32[1,128], index: 8, kind: input, shape index: {}]
  %s9 = inlined_call_operand.vmem [shape: f32[8,128], index: 9, kind: output, shape index: {}]
  %s10 = sld [smem:[#allocation0]]
  $region46: #{interesting_gan_discriminator.1} parent=0
    _
  %s12 = ssub.s32 1, %s10
  %s13 = scalar_select 0, %s12, %s10
  // Predicated region
  $region2: #{interesting_gan_discriminator.1} parent=0 // pred_check
    _
  $region3: #{interesting_gan_discriminator.1} parent=0 // pred_check_branch
    %15 = sbr.rel (0) target = $region5
  $region4: #{interesting_gan_discriminator.1} parent=0 // pred_region
    _
  $region5: #{interesting_gan_discriminator.1} parent=0 // pred_fallthru
    _
  // Predicated region
  $region6: #{interesting_gan_discriminator.1} parent=0 // pred_check
    _
  $region7: #{interesting_gan_discriminator.1} parent=0 // pred_check_branch
    %17 = sbr.rel (0) target = $region9
  $region8: #{interesting_gan_discriminator.1} parent=0 // pred_region
    _
  $region9: #{interesting_gan_discriminator.1} parent=0 // pred_fallthru
    _
  // Predicated region
  $region10: #{interesting_gan_discriminator.1} parent=0 // pred_check
    _
  $region11: #{interesting_gan_discriminator.1} parent=0 // pred_check_branch
    %19 = sbr.rel (0) target = $region13
  $region12: #{interesting_gan_discriminator.1} parent=0 // pred_region
    _
  $region13: #{interesting_gan_discriminator.1} parent=0 // pred_fallthru
    _
  // Predicated region
  $region14: #{interesting_gan_discriminator.1} parent=0 // pred_check
    _
  $region15: #{interesting_gan_discriminator.1} parent=0 // pred_check_branch
    %21 = sbr.rel (0) target = $region17
  $region16: #{interesting_gan_discriminator.1} parent=0 // pred_region
    _
  $region17: #{interesting_gan_discriminator.1} parent=0 // pred_fallthru
    _
  // Predicated region
  $region18: #{interesting_gan_discriminator.1} parent=0 // pred_check
    _
  $region19: #{interesting_gan_discriminator.1} parent=0 // pred_check_branch
    %23 = sbr.rel (0) target = $region21
  $region20: #{interesting_gan_discriminator.1} parent=0 // pred_region
    _
  $region21: #{interesting_gan_discriminator.1} parent=0 // pred_fallthru
    _
  // Predicated region
  $region22: #{interesting_gan_discriminator.1} parent=0 // pred_check
    _
  $region23: #{interesting_gan_discriminator.1} parent=0 // pred_check_branch
    %25 = sbr.rel (0) target = $region25
  $region24: #{interesting_gan_discriminator.1} parent=0 // pred_region
    _
  $region25: #{interesting_gan_discriminator.1} parent=0 // pred_fallthru
    _
  // Predicated region
  $region26: #{interesting_gan_discriminator.1} parent=0 // pred_check
    _
  $region27: #{interesting_gan_discriminator.1} parent=0 // pred_check_branch
    %27 = sbr.rel (0) target = $region29
  $region28: #{interesting_gan_discriminator.1} parent=0 // pred_region
    _
  $region29: #{interesting_gan_discriminator.1} parent=0 // pred_fallthru
    _
  // Predicated region
  $region30: #{interesting_gan_discriminator.1} parent=0 // pred_check
    _
  $region31: #{interesting_gan_discriminator.1} parent=0 // pred_check_branch
    %29 = sbr.rel (0) target = $region33
  $region32: #{interesting_gan_discriminator.1} parent=0 // pred_region
    _
  $region33: #{interesting_gan_discriminator.1} parent=0 // pred_fallthru
    _
  // Predicated region
  $region34: #{interesting_gan_discriminator.1} parent=0 // pred_check
    _
  $region35: #{interesting_gan_discriminator.1} parent=0 // pred_check_branch
    %31 = sbr.rel (0) target = $region37
  $region36: #{interesting_gan_discriminator.1} parent=0 // pred_region
    _
  $region37: #{interesting_gan_discriminator.1} parent=0 // pred_fallthru
    _
  %v33 = vld [vmem:[%s0] sm:$0xff]
  %v34 = vld [vmem:[%s0 + $0x8] sm:$0xff]
  %v35 = vld [vmem:[%s0 + $0x10] sm:$0xff]
  %v36 = vld [vmem:[%s0 + $0x18] sm:$0xff]
  %v37 = vld [vmem:[%s0 + $0x20] sm:$0xff]
  %v38 = vld [vmem:[%s0 + $0x28] sm:$0xff]
  %v39 = vld [vmem:[%s0 + $0x30] sm:$0xff]
  %v40 = vld [vmem:[%s0 + $0x38] sm:$0xff]
  %v41 = vld [vmem:[%s0 + $0x40] sm:$0xff]
  %v42 = vld [vmem:[%s0 + $0x48] sm:$0xff]
  %v43 = vld [vmem:[%s0 + $0x50] sm:$0xff]
  %v44 = vld [vmem:[%s0 + $0x58] sm:$0xff]
  %v45 = vld [vmem:[%s1] sm:$0xff]
  %v46 = vld [vmem:[%s1 + $0x8] sm:$0xff]
  %v47 = vld [vmem:[%s1 + $0x10] sm:$0xff]
  %v48 = vld [vmem:[%s1 + $0x18] sm:$0xff]
  %v49 = vld [vmem:[%s1 + $0x20] sm:$0xff]
  %v50 = vld [vmem:[%s1 + $0x28] sm:$0xff]
  %v51 = vld [vmem:[%s1 + $0x30] sm:$0xff]
  %v52 = vld [vmem:[%s1 + $0x38] sm:$0xff]
  %v53 = vld [vmem:[%s1 + $0x40] sm:$0xff]
  %v54 = vld [vmem:[%s1 + $0x48] sm:$0xff]
  %v55 = vld [vmem:[%s1 + $0x50] sm:$0xff]
  %v56 = vld [vmem:[%s1 + $0x58] sm:$0xff]
  %v57 = vld [vmem:[%s1 + $0x60] sm:$0xff]
  %v58 = vld [vmem:[%s1 + $0x68] sm:$0xff]
  %v59 = vld [vmem:[%s1 + $0x70] sm:$0xff]
  %v60 = vld [vmem:[%s1 + $0x78] sm:$0xff]
  %v61 = vld [vmem:[%s1 + $0x80] sm:$0xff]
  %v62 = vld [vmem:[%s1 + $0x88] sm:$0xff]
  %v63 = vld [vmem:[%s1 + $0x90] sm:$0xff]
  %v64 = vld [vmem:[%s1 + $0x98] sm:$0xff]
  %v65 = vld [vmem:[%s1 + $0xa0] sm:$0xff]
  %v66 = vld [vmem:[%s1 + $0xa8] sm:$0xff]
  %v67 = vld [vmem:[%s1 + $0xb0] sm:$0xff]
  %v68 = vld [vmem:[%s1 + $0xb8] sm:$0xff]
  %v69 = vld [vmem:[%s1 + $0xc0] sm:$0xff]
  %v70 = vld [vmem:[%s1 + $0xc8] sm:$0xff]
  %v71 = vld [vmem:[%s1 + $0xd0] sm:$0xff]
  %v72 = vld [vmem:[%s1 + $0xd8] sm:$0xff]
  %v73 = vld [vmem:[%s1 + $0xe0] sm:$0xff]
  %v74 = vld [vmem:[%s1 + $0xe8] sm:$0xff]
  %v75 = vld [vmem:[%s1 + $0xf0] sm:$0xff]
  %v76 = vld [vmem:[%s1 + $0xf8] sm:$0xff]
  %v77 = vld [vmem:[%s1 + $0x100] sm:$0xff]
  %v78 = vld [vmem:[%s1 + $0x108] sm:$0xff]
  %v79 = vld [vmem:[%s1 + $0x110] sm:$0xff]
  %v80 = vld [vmem:[%s1 + $0x118] sm:$0xff]
  %v81 = vld [vmem:[%s1 + $0x120] sm:$0xff]
  %v82 = vld [vmem:[%s1 + $0x128] sm:$0xff]
  %v83 = vld [vmem:[%s1 + $0x130] sm:$0xff]
  %v84 = vld [vmem:[%s1 + $0x138] sm:$0xff]
  %v85 = vld [vmem:[%s1 + $0x140] sm:$0xff]
  %v86 = vld [vmem:[%s1 + $0x148] sm:$0xff]
  %v87 = vld [vmem:[%s1 + $0x150] sm:$0xff]
  %v88 = vld [vmem:[%s1 + $0x158] sm:$0xff]
  %v89 = vld [vmem:[%s1 + $0x160] sm:$0xff]
  %v90 = vld [vmem:[%s1 + $0x168] sm:$0xff]
  %v91 = vld [vmem:[%s1 + $0x170] sm:$0xff]
  %v92 = vld [vmem:[%s1 + $0x178] sm:$0xff]
  %v93 = vld [vmem:[%s1 + $0x180] sm:$0xff]
  %v94 = vld [vmem:[%s1 + $0x188] sm:$0xff]
  %v95 = vld [vmem:[%s1 + $0x190] sm:$0xff]
  %v96 = vld [vmem:[%s1 + $0x198] sm:$0xff]
  %v97 = vld [vmem:[%s1 + $0x1a0] sm:$0xff]
  %v98 = vld [vmem:[%s1 + $0x1a8] sm:$0xff]
  %v99 = vld [vmem:[%s1 + $0x1b0] sm:$0xff]
  %v100 = vld [vmem:[%s1 + $0x1b8] sm:$0xff]
  %v101 = vld [vmem:[%s1 + $0x1c0] sm:$0xff]
  %v102 = vld [vmem:[%s1 + $0x1c8] sm:$0xff]
  %v103 = vld [vmem:[%s1 + $0x1d0] sm:$0xff]
  %v104 = vld [vmem:[%s1 + $0x1d8] sm:$0xff]
  %v105 = vld [vmem:[%s1 + $0x1e0] sm:$0xff]
  %v106 = vld [vmem:[%s1 + $0x1e8] sm:$0xff]
  %v107 = vld [vmem:[%s1 + $0x1f0] sm:$0xff]
  %v108 = vld [vmem:[%s1 + $0x1f8] sm:$0xff]
  %v109 = vld [vmem:[%s1 + $0x200] sm:$0xff]
  %v110 = vld [vmem:[%s1 + $0x208] sm:$0xff]
  %v111 = vld [vmem:[%s1 + $0x210] sm:$0xff]
  %v112 = vld [vmem:[%s1 + $0x218] sm:$0xff]
  %v113 = vld [vmem:[%s1 + $0x220] sm:$0xff]
  %v114 = vld [vmem:[%s1 + $0x228] sm:$0xff]
  %v115 = vld [vmem:[%s1 + $0x230] sm:$0xff]
  %v116 = vld [vmem:[%s1 + $0x238] sm:$0xff]
  %v117 = vld [vmem:[%s1 + $0x240] sm:$0xff]
  %v118 = vld [vmem:[%s1 + $0x248] sm:$0xff]
  %v119 = vld [vmem:[%s1 + $0x250] sm:$0xff]
  %v120 = vld [vmem:[%s1 + $0x258] sm:$0xff]
  %v121 = vld [vmem:[%s1 + $0x260] sm:$0xff]
  %v122 = vld [vmem:[%s1 + $0x268] sm:$0xff]
  %v123 = vld [vmem:[%s1 + $0x270] sm:$0xff]
  %v124 = vld [vmem:[%s1 + $0x278] sm:$0xff]
  %v125 = vld [vmem:[%s1 + $0x280] sm:$0xff]
  %v126 = vld [vmem:[%s1 + $0x288] sm:$0xff]
  %v127 = vld [vmem:[%s1 + $0x290] sm:$0xff]
  %v128 = vld [vmem:[%s1 + $0x298] sm:$0xff]
  %v129 = vld [vmem:[%s1 + $0x2a0] sm:$0xff]
  %v130 = vld [vmem:[%s1 + $0x2a8] sm:$0xff]
  %v131 = vld [vmem:[%s1 + $0x2b0] sm:$0xff]
  %v132 = vld [vmem:[%s1 + $0x2b8] sm:$0xff]
  %v133 = vld [vmem:[%s1 + $0x2c0] sm:$0xff]
  %v134 = vld [vmem:[%s1 + $0x2c8] sm:$0xff]
  %v135 = vld [vmem:[%s1 + $0x2d0] sm:$0xff]
  %v136 = vld [vmem:[%s1 + $0x2d8] sm:$0xff]
  %v137 = vld [vmem:[%s1 + $0x2e0] sm:$0xff]
  %v138 = vld [vmem:[%s1 + $0x2e8] sm:$0xff]
  %v139 = vld [vmem:[%s1 + $0x2f0] sm:$0xff]
  %v140 = vld [vmem:[%s1 + $0x2f8] sm:$0xff]
  %v141 = vld [vmem:[%s1 + $0x300] sm:$0xff]
  %v142 = vld [vmem:[%s1 + $0x308] sm:$0xff]
  %v143 = vld [vmem:[%s1 + $0x310] sm:$0xff]
  %v144 = vld [vmem:[%s1 + $0x318] sm:$0xff]
  %v145 = vld [vmem:[%s1 + $0x320] sm:$0xff]
  %v146 = vld [vmem:[%s1 + $0x328] sm:$0xff]
  %v147 = vld [vmem:[%s1 + $0x330] sm:$0xff]
  %v148 = vld [vmem:[%s1 + $0x338] sm:$0xff]
  %v149 = vld [vmem:[%s1 + $0x340] sm:$0xff]
  %v150 = vld [vmem:[%s1 + $0x348] sm:$0xff]
  %v151 = vld [vmem:[%s1 + $0x350] sm:$0xff]
  %v152 = vld [vmem:[%s1 + $0x358] sm:$0xff]
  %v153 = vld [vmem:[%s1 + $0x360] sm:$0xff]
  %v154 = vld [vmem:[%s1 + $0x368] sm:$0xff]
  %v155 = vld [vmem:[%s1 + $0x370] sm:$0xff]
  %v156 = vld [vmem:[%s1 + $0x378] sm:$0xff]
  %v157 = vld [vmem:[%s1 + $0x380] sm:$0xff]
  %v158 = vld [vmem:[%s1 + $0x388] sm:$0xff]
  %v159 = vld [vmem:[%s1 + $0x390] sm:$0xff]
  %v160 = vld [vmem:[%s1 + $0x398] sm:$0xff]
  %v161 = vld [vmem:[%s1 + $0x3a0] sm:$0xff]
  %v162 = vld [vmem:[%s1 + $0x3a8] sm:$0xff]
  %v163 = vld [vmem:[%s1 + $0x3b0] sm:$0xff]
  %v164 = vld [vmem:[%s1 + $0x3b8] sm:$0xff]
  %v165 = vld [vmem:[%s1 + $0x3c0] sm:$0xff]
  %v166 = vld [vmem:[%s1 + $0x3c8] sm:$0xff]
  %v167 = vld [vmem:[%s1 + $0x3d0] sm:$0xff]
  %v168 = vld [vmem:[%s1 + $0x3d8] sm:$0xff]
  %v169 = vld [vmem:[%s1 + $0x3e0] sm:$0xff]
  %v170 = vld [vmem:[%s1 + $0x3e8] sm:$0xff]
  %v171 = vld [vmem:[%s1 + $0x3f0] sm:$0xff]
  %v172 = vld [vmem:[%s1 + $0x3f8] sm:$0xff]
  %v173 = vld [vmem:[%s1 + $0x400] sm:$0xff]
  %v174 = vld [vmem:[%s1 + $0x408] sm:$0xff]
  %v175 = vld [vmem:[%s1 + $0x410] sm:$0xff]
  %v176 = vld [vmem:[%s1 + $0x418] sm:$0xff]
  %v177 = vld [vmem:[%s1 + $0x420] sm:$0xff]
  %v178 = vld [vmem:[%s1 + $0x428] sm:$0xff]
  %v179 = vld [vmem:[%s1 + $0x430] sm:$0xff]
  %v180 = vld [vmem:[%s1 + $0x438] sm:$0xff]
  %v181 = vld [vmem:[%s1 + $0x440] sm:$0xff]
  %v182 = vld [vmem:[%s1 + $0x448] sm:$0xff]
  %v183 = vld [vmem:[%s1 + $0x450] sm:$0xff]
  %v184 = vld [vmem:[%s1 + $0x458] sm:$0xff]
  %v185 = vld [vmem:[%s1 + $0x460] sm:$0xff]
  %v186 = vld [vmem:[%s1 + $0x468] sm:$0xff]
  %v187 = vld [vmem:[%s1 + $0x470] sm:$0xff]
  %v188 = vld [vmem:[%s1 + $0x478] sm:$0xff]
  %v189 = vld [vmem:[%s1 + $0x480] sm:$0xff]
  %v190 = vld [vmem:[%s1 + $0x488] sm:$0xff]
  %v191 = vld [vmem:[%s1 + $0x490] sm:$0xff]
  %v192 = vld [vmem:[%s1 + $0x498] sm:$0xff]
  %v193 = vld [vmem:[%s1 + $0x4a0] sm:$0xff]
  %v194 = vld [vmem:[%s1 + $0x4a8] sm:$0xff]
  %v195 = vld [vmem:[%s1 + $0x4b0] sm:$0xff]
  %v196 = vld [vmem:[%s1 + $0x4b8] sm:$0xff]
  %v197 = vld [vmem:[%s1 + $0x4c0] sm:$0xff]
  %v198 = vld [vmem:[%s1 + $0x4c8] sm:$0xff]
  %v199 = vld [vmem:[%s1 + $0x4d0] sm:$0xff]
  %v200 = vld [vmem:[%s1 + $0x4d8] sm:$0xff]
  %v201 = vld [vmem:[%s1 + $0x4e0] sm:$0xff]
  %v202 = vld [vmem:[%s1 + $0x4e8] sm:$0xff]
  %v203 = vld [vmem:[%s1 + $0x4f0] sm:$0xff]
  %v204 = vld [vmem:[%s1 + $0x4f8] sm:$0xff]
  %v205 = vld [vmem:[%s1 + $0x500] sm:$0xff]
  %v206 = vld [vmem:[%s1 + $0x508] sm:$0xff]
  %v207 = vld [vmem:[%s1 + $0x510] sm:$0xff]
  %v208 = vld [vmem:[%s1 + $0x518] sm:$0xff]
  %v209 = vld [vmem:[%s1 + $0x520] sm:$0xff]
  %v210 = vld [vmem:[%s1 + $0x528] sm:$0xff]
  %v211 = vld [vmem:[%s1 + $0x530] sm:$0xff]
  %v212 = vld [vmem:[%s1 + $0x538] sm:$0xff]
  %v213 = vld [vmem:[%s1 + $0x540] sm:$0xff]
  %v214 = vld [vmem:[%s1 + $0x548] sm:$0xff]
  %v215 = vld [vmem:[%s1 + $0x550] sm:$0xff]
  %v216 = vld [vmem:[%s1 + $0x558] sm:$0xff]
  %v217 = vld [vmem:[%s1 + $0x560] sm:$0xff]
  %v218 = vld [vmem:[%s1 + $0x568] sm:$0xff]
  %v219 = vld [vmem:[%s1 + $0x570] sm:$0xff]
  %v220 = vld [vmem:[%s1 + $0x578] sm:$0xff]
  %v221 = vld [vmem:[%s1 + $0x580] sm:$0xff]
  %v222 = vld [vmem:[%s1 + $0x588] sm:$0xff]
  %v223 = vld [vmem:[%s1 + $0x590] sm:$0xff]
  %v224 = vld [vmem:[%s1 + $0x598] sm:$0xff]
  %v225 = vld [vmem:[%s1 + $0x5a0] sm:$0xff]
  %v226 = vld [vmem:[%s1 + $0x5a8] sm:$0xff]
  %v227 = vld [vmem:[%s1 + $0x5b0] sm:$0xff]
  %v228 = vld [vmem:[%s1 + $0x5b8] sm:$0xff]
  %v229 = vld [vmem:[%s1 + $0x5c0] sm:$0xff]
  %v230 = vld [vmem:[%s1 + $0x5c8] sm:$0xff]
  %v231 = vld [vmem:[%s1 + $0x5d0] sm:$0xff]
  %v232 = vld [vmem:[%s1 + $0x5d8] sm:$0xff]
  %v233 = vld [vmem:[%s1 + $0x5e0] sm:$0xff]
  %v234 = vld [vmem:[%s1 + $0x5e8] sm:$0xff]
  %v235 = vld [vmem:[%s1 + $0x5f0] sm:$0xff]
  %v236 = vld [vmem:[%s1 + $0x5f8] sm:$0xff]
  %v237 = vld [vmem:[%s1 + $0x600] sm:$0xff]
  %v238 = vld [vmem:[%s1 + $0x608] sm:$0xff]
  %v239 = vld [vmem:[%s1 + $0x610] sm:$0xff]
  %v240 = vld [vmem:[%s1 + $0x618] sm:$0xff]
  %v241 = vld [vmem:[%s1 + $0x620] sm:$0xff]
  %v242 = vld [vmem:[%s1 + $0x628] sm:$0xff]
  %v243 = vld [vmem:[%s1 + $0x630] sm:$0xff]
  %v244 = vld [vmem:[%s1 + $0x638] sm:$0xff]
  %v245 = vld [vmem:[%s1 + $0x640] sm:$0xff]
  %v246 = vld [vmem:[%s1 + $0x648] sm:$0xff]
  %v247 = vld [vmem:[%s1 + $0x650] sm:$0xff]
  %v248 = vld [vmem:[%s1 + $0x658] sm:$0xff]
  %v249 = vld [vmem:[%s1 + $0x660] sm:$0xff]
  %v250 = vld [vmem:[%s1 + $0x668] sm:$0xff]
  %v251 = vld [vmem:[%s1 + $0x670] sm:$0xff]
  %v252 = vld [vmem:[%s1 + $0x678] sm:$0xff]
  %v253 = vld [vmem:[%s1 + $0x680] sm:$0xff]
  %v254 = vld [vmem:[%s1 + $0x688] sm:$0xff]
  %v255 = vld [vmem:[%s1 + $0x690] sm:$0xff]
  %v256 = vld [vmem:[%s1 + $0x698] sm:$0xff]
  %v257 = vld [vmem:[%s1 + $0x6a0] sm:$0xff]
  %v258 = vld [vmem:[%s1 + $0x6a8] sm:$0xff]
  %v259 = vld [vmem:[%s1 + $0x6b0] sm:$0xff]
  %v260 = vld [vmem:[%s1 + $0x6b8] sm:$0xff]
  %v261 = vld [vmem:[%s1 + $0x6c0] sm:$0xff]
  %v262 = vld [vmem:[%s1 + $0x6c8] sm:$0xff]
  %v263 = vld [vmem:[%s1 + $0x6d0] sm:$0xff]
  %v264 = vld [vmem:[%s1 + $0x6d8] sm:$0xff]
  %v265 = vld [vmem:[%s1 + $0x6e0] sm:$0xff]
  %v266 = vld [vmem:[%s1 + $0x6e8] sm:$0xff]
  %v267 = vld [vmem:[%s1 + $0x6f0] sm:$0xff]
  %v268 = vld [vmem:[%s1 + $0x6f8] sm:$0xff]
  %v269 = vld [vmem:[%s1 + $0x700] sm:$0xff]
  %v270 = vld [vmem:[%s1 + $0x708] sm:$0xff]
  %v271 = vld [vmem:[%s1 + $0x710] sm:$0xff]
  %v272 = vld [vmem:[%s1 + $0x718] sm:$0xff]
  %v273 = vld [vmem:[%s1 + $0x720] sm:$0xff]
  %v274 = vld [vmem:[%s1 + $0x728] sm:$0xff]
  %v275 = vld [vmem:[%s1 + $0x730] sm:$0xff]
  %v276 = vld [vmem:[%s1 + $0x738] sm:$0xff]
  %v277 = vld [vmem:[%s1 + $0x740] sm:$0xff]
  %v278 = vld [vmem:[%s1 + $0x748] sm:$0xff]
  %v279 = vld [vmem:[%s1 + $0x750] sm:$0xff]
  %v280 = vld [vmem:[%s1 + $0x758] sm:$0xff]
  %v281 = vld [vmem:[%s1 + $0x760] sm:$0xff]
  %v282 = vld [vmem:[%s1 + $0x768] sm:$0xff]
  %v283 = vld [vmem:[%s1 + $0x770] sm:$0xff]
  %v284 = vld [vmem:[%s1 + $0x778] sm:$0xff]
  %v285 = vld [vmem:[%s1 + $0x780] sm:$0xff]
  %v286 = vld [vmem:[%s1 + $0x788] sm:$0xff]
  %v287 = vld [vmem:[%s1 + $0x790] sm:$0xff]
  %v288 = vld [vmem:[%s1 + $0x798] sm:$0xff]
  %v289 = vld [vmem:[%s1 + $0x7a0] sm:$0xff]
  %v290 = vld [vmem:[%s1 + $0x7a8] sm:$0xff]
  %v291 = vld [vmem:[%s1 + $0x7b0] sm:$0xff]
  %v292 = vld [vmem:[%s1 + $0x7b8] sm:$0xff]
  %v293 = vld [vmem:[%s1 + $0x7c0] sm:$0xff]
  %v294 = vld [vmem:[%s1 + $0x7c8] sm:$0xff]
  %v295 = vld [vmem:[%s1 + $0x7d0] sm:$0xff]
  %v296 = vld [vmem:[%s1 + $0x7d8] sm:$0xff]
  %v297 = vld [vmem:[%s1 + $0x7e0] sm:$0xff]
  %v298 = vld [vmem:[%s1 + $0x7e8] sm:$0xff]
  %v299 = vld [vmem:[%s1 + $0x7f0] sm:$0xff]
  %v300 = vld [vmem:[%s1 + $0x7f8] sm:$0xff]
  %v301 = vld [vmem:[%s1 + $0x800] sm:$0xff]
  %v302 = vld [vmem:[%s1 + $0x808] sm:$0xff]
  %v303 = vld [vmem:[%s1 + $0x810] sm:$0xff]
  %v304 = vld [vmem:[%s1 + $0x818] sm:$0xff]
  %v305 = vld [vmem:[%s1 + $0x820] sm:$0xff]
  %v306 = vld [vmem:[%s1 + $0x828] sm:$0xff]
  %v307 = vld [vmem:[%s1 + $0x830] sm:$0xff]
  %v308 = vld [vmem:[%s1 + $0x838] sm:$0xff]
  %v309 = vld [vmem:[%s1 + $0x840] sm:$0xff]
  %v310 = vld [vmem:[%s1 + $0x848] sm:$0xff]
  %v311 = vld [vmem:[%s1 + $0x850] sm:$0xff]
  %v312 = vld [vmem:[%s1 + $0x858] sm:$0xff]
  %v313 = vld [vmem:[%s1 + $0x860] sm:$0xff]
  %v314 = vld [vmem:[%s1 + $0x868] sm:$0xff]
  %v315 = vld [vmem:[%s1 + $0x870] sm:$0xff]
  %v316 = vld [vmem:[%s1 + $0x878] sm:$0xff]
  %v317 = vld [vmem:[%s1 + $0x880] sm:$0xff]
  %v318 = vld [vmem:[%s1 + $0x888] sm:$0xff]
  %v319 = vld [vmem:[%s1 + $0x890] sm:$0xff]
  %v320 = vld [vmem:[%s1 + $0x898] sm:$0xff]
  %v321 = vld [vmem:[%s1 + $0x8a0] sm:$0xff]
  %v322 = vld [vmem:[%s1 + $0x8a8] sm:$0xff]
  %v323 = vld [vmem:[%s1 + $0x8b0] sm:$0xff]
  %v324 = vld [vmem:[%s1 + $0x8b8] sm:$0xff]
  %v325 = vld [vmem:[%s1 + $0x8c0] sm:$0xff]
  %v326 = vld [vmem:[%s1 + $0x8c8] sm:$0xff]
  %v327 = vld [vmem:[%s1 + $0x8d0] sm:$0xff]
  %v328 = vld [vmem:[%s1 + $0x8d8] sm:$0xff]
  %v329 = vld [vmem:[%s1 + $0x8e0] sm:$0xff]
  %v330 = vld [vmem:[%s1 + $0x8e8] sm:$0xff]
  %v331 = vld [vmem:[%s1 + $0x8f0] sm:$0xff]
  %v332 = vld [vmem:[%s1 + $0x8f8] sm:$0xff]
  %v333 = vld [vmem:[%s1 + $0x900] sm:$0xff]
  %v334 = vld [vmem:[%s1 + $0x908] sm:$0xff]
  %v335 = vld [vmem:[%s1 + $0x910] sm:$0xff]
  %v336 = vld [vmem:[%s1 + $0x918] sm:$0xff]
  %v337 = vld [vmem:[%s1 + $0x920] sm:$0xff]
  %v338 = vld [vmem:[%s1 + $0x928] sm:$0xff]
  %v339 = vld [vmem:[%s1 + $0x930] sm:$0xff]
  %v340 = vld [vmem:[%s1 + $0x938] sm:$0xff]
  %v341 = vld [vmem:[%s1 + $0x940] sm:$0xff]
  %v342 = vld [vmem:[%s1 + $0x948] sm:$0xff]
  %v343 = vld [vmem:[%s1 + $0x950] sm:$0xff]
  %v344 = vld [vmem:[%s1 + $0x958] sm:$0xff]
  %v345 = vld [vmem:[%s1 + $0x960] sm:$0xff]
  %v346 = vld [vmem:[%s1 + $0x968] sm:$0xff]
  %v347 = vld [vmem:[%s1 + $0x970] sm:$0xff]
  %v348 = vld [vmem:[%s1 + $0x978] sm:$0xff]
  %v349 = vld [vmem:[%s1 + $0x980] sm:$0xff]
  %v350 = vld [vmem:[%s1 + $0x988] sm:$0xff]
  %v351 = vld [vmem:[%s1 + $0x990] sm:$0xff]
  %v352 = vld [vmem:[%s1 + $0x998] sm:$0xff]
  %v353 = vld [vmem:[%s1 + $0x9a0] sm:$0xff]
  %v354 = vld [vmem:[%s1 + $0x9a8] sm:$0xff]
  %v355 = vld [vmem:[%s1 + $0x9b0] sm:$0xff]
  %v356 = vld [vmem:[%s1 + $0x9b8] sm:$0xff]
  %v357 = vld [vmem:[%s1 + $0x9c0] sm:$0xff]
  %v358 = vld [vmem:[%s1 + $0x9c8] sm:$0xff]
  %v359 = vld [vmem:[%s1 + $0x9d0] sm:$0xff]
  %v360 = vld [vmem:[%s1 + $0x9d8] sm:$0xff]
  %v361 = vld [vmem:[%s1 + $0x9e0] sm:$0xff]
  %v362 = vld [vmem:[%s1 + $0x9e8] sm:$0xff]
  %v363 = vld [vmem:[%s1 + $0x9f0] sm:$0xff]
  %v364 = vld [vmem:[%s1 + $0x9f8] sm:$0xff]
  %v365 = vld [vmem:[%s1 + $0xa00] sm:$0xff]
  %v366 = vld [vmem:[%s1 + $0xa08] sm:$0xff]
  %v367 = vld [vmem:[%s1 + $0xa10] sm:$0xff]
  %v368 = vld [vmem:[%s1 + $0xa18] sm:$0xff]
  %v369 = vld [vmem:[%s1 + $0xa20] sm:$0xff]
  %v370 = vld [vmem:[%s1 + $0xa28] sm:$0xff]
  %v371 = vld [vmem:[%s1 + $0xa30] sm:$0xff]
  %v372 = vld [vmem:[%s1 + $0xa38] sm:$0xff]
  %v373 = vld [vmem:[%s1 + $0xa40] sm:$0xff]
  %v374 = vld [vmem:[%s1 + $0xa48] sm:$0xff]
  %v375 = vld [vmem:[%s1 + $0xa50] sm:$0xff]
  %v376 = vld [vmem:[%s1 + $0xa58] sm:$0xff]
  %v377 = vld [vmem:[%s1 + $0xa60] sm:$0xff]
  %v378 = vld [vmem:[%s1 + $0xa68] sm:$0xff]
  %v379 = vld [vmem:[%s1 + $0xa70] sm:$0xff]
  %v380 = vld [vmem:[%s1 + $0xa78] sm:$0xff]
  %v381 = vld [vmem:[%s1 + $0xa80] sm:$0xff]
  %v382 = vld [vmem:[%s1 + $0xa88] sm:$0xff]
  %v383 = vld [vmem:[%s1 + $0xa90] sm:$0xff]
  %v384 = vld [vmem:[%s1 + $0xa98] sm:$0xff]
  %v385 = vld [vmem:[%s1 + $0xaa0] sm:$0xff]
  %v386 = vld [vmem:[%s1 + $0xaa8] sm:$0xff]
  %v387 = vld [vmem:[%s1 + $0xab0] sm:$0xff]
  %v388 = vld [vmem:[%s1 + $0xab8] sm:$0xff]
  %v389 = vld [vmem:[%s1 + $0xac0] sm:$0xff]
  %v390 = vld [vmem:[%s1 + $0xac8] sm:$0xff]
  %v391 = vld [vmem:[%s1 + $0xad0] sm:$0xff]
  %v392 = vld [vmem:[%s1 + $0xad8] sm:$0xff]
  %v393 = vld [vmem:[%s1 + $0xae0] sm:$0xff]
  %v394 = vld [vmem:[%s1 + $0xae8] sm:$0xff]
  %v395 = vld [vmem:[%s1 + $0xaf0] sm:$0xff]
  %v396 = vld [vmem:[%s1 + $0xaf8] sm:$0xff]
  %v397 = vld [vmem:[%s1 + $0xb00] sm:$0xff]
  %v398 = vld [vmem:[%s1 + $0xb08] sm:$0xff]
  %v399 = vld [vmem:[%s1 + $0xb10] sm:$0xff]
  %v400 = vld [vmem:[%s1 + $0xb18] sm:$0xff]
  %v401 = vld [vmem:[%s1 + $0xb20] sm:$0xff]
  %v402 = vld [vmem:[%s1 + $0xb28] sm:$0xff]
  %v403 = vld [vmem:[%s1 + $0xb30] sm:$0xff]
  %v404 = vld [vmem:[%s1 + $0xb38] sm:$0xff]
  %v405 = vld [vmem:[%s1 + $0xb40] sm:$0xff]
  %v406 = vld [vmem:[%s1 + $0xb48] sm:$0xff]
  %v407 = vld [vmem:[%s1 + $0xb50] sm:$0xff]
  %v408 = vld [vmem:[%s1 + $0xb58] sm:$0xff]
  %v409 = vld [vmem:[%s1 + $0xb60] sm:$0xff]
  %v410 = vld [vmem:[%s1 + $0xb68] sm:$0xff]
  %v411 = vld [vmem:[%s1 + $0xb70] sm:$0xff]
  %v412 = vld [vmem:[%s1 + $0xb78] sm:$0xff]
  %v413 = vld [vmem:[%s1 + $0xb80] sm:$0xff]
  %v414 = vld [vmem:[%s1 + $0xb88] sm:$0xff]
  %v415 = vld [vmem:[%s1 + $0xb90] sm:$0xff]
  %v416 = vld [vmem:[%s1 + $0xb98] sm:$0xff]
  %v417 = vld [vmem:[%s1 + $0xba0] sm:$0xff]
  %v418 = vld [vmem:[%s1 + $0xba8] sm:$0xff]
  %v419 = vld [vmem:[%s1 + $0xbb0] sm:$0xff]
  %v420 = vld [vmem:[%s1 + $0xbb8] sm:$0xff]
  %v421 = vld [vmem:[%s1 + $0xbc0] sm:$0xff]
  %v422 = vld [vmem:[%s1 + $0xbc8] sm:$0xff]
  %v423 = vld [vmem:[%s1 + $0xbd0] sm:$0xff]
  %v424 = vld [vmem:[%s1 + $0xbd8] sm:$0xff]
  %v425 = vld [vmem:[%s1 + $0xbe0] sm:$0xff]
  %v426 = vld [vmem:[%s1 + $0xbe8] sm:$0xff]
  %v427 = vld [vmem:[%s1 + $0xbf0] sm:$0xff]
  %v428 = vld [vmem:[%s1 + $0xbf8] sm:$0xff]
  %v429 = vld [vmem:[%s2] sm:$0x3]
  %v431 = vperm.slane %v429, 0
  %v432 = vperm.slane %v429, 1
  %v447 = vunpack.c.l.b16 %v33
  %v448 = vunpack.c.h.b16 %v33
  %v449 = vunpack.c.l.b16 %v34
  %v450 = vunpack.c.h.b16 %v34
  %v451 = vunpack.c.l.b16 %v35
  %v452 = vunpack.c.h.b16 %v35
  %v453 = vunpack.c.l.b16 %v36
  %v454 = vunpack.c.h.b16 %v36
  %v455 = vunpack.c.l.b16 %v37
  %v456 = vunpack.c.h.b16 %v37
  %v457 = vunpack.c.l.b16 %v38
  %v458 = vunpack.c.h.b16 %v38
  %v459 = vunpack.c.l.b16 %v39
  %v460 = vunpack.c.h.b16 %v39
  %v461 = vunpack.c.l.b16 %v40
  %v462 = vunpack.c.h.b16 %v40
  %v463 = vunpack.c.l.b16 %v41
  %v464 = vunpack.c.h.b16 %v41
  %v465 = vunpack.c.l.b16 %v42
  %v466 = vunpack.c.h.b16 %v42
  %v467 = vunpack.c.l.b16 %v43
  %v468 = vunpack.c.h.b16 %v43
  %v469 = vunpack.c.l.b16 %v44
  %v470 = vunpack.c.h.b16 %v44
  %v471 = vpack.c.b16 %v447, %v447
  %v472 = vpack.c.b16 %v448, %v448
  %v473 = vpack.c.b16 %v449, %v449
  %v474 = vpack.c.b16 %v450, %v450
  %v475 = vpack.c.b16 %v451, %v451
  %v476 = vpack.c.b16 %v452, %v452
  %v477 = vpack.c.b16 %v453, %v453
  %v478 = vpack.c.b16 %v454, %v454
  %v479 = vpack.c.b16 %v455, %v455
  %v480 = vpack.c.b16 %v456, %v456
  %v481 = vpack.c.b16 %v457, %v457
  %v482 = vpack.c.b16 %v458, %v458
  %v483 = vpack.c.b16 %v459, %v459
  %v484 = vpack.c.b16 %v460, %v460
  %v485 = vpack.c.b16 %v461, %v461
  %v486 = vpack.c.b16 %v462, %v462
  %v487 = vpack.c.b16 %v463, %v463
  %v488 = vpack.c.b16 %v464, %v464
  %v489 = vpack.c.b16 %v465, %v465
  %v490 = vpack.c.b16 %v466, %v466
  %v491 = vpack.c.b16 %v467, %v467
  %v492 = vpack.c.b16 %v468, %v468
  %v493 = vpack.c.b16 %v469, %v469
  %v494 = vpack.c.b16 %v470, %v470
  %v903 = vunpack.c.l.b16 %v45
  %v904 = vunpack.c.h.b16 %v45
  %v905 = vunpack.c.l.b16 %v46
  %v906 = vunpack.c.h.b16 %v46
  %v907 = vunpack.c.l.b16 %v47
  %v908 = vunpack.c.h.b16 %v47
  %v909 = vunpack.c.l.b16 %v48
  %v910 = vunpack.c.h.b16 %v48
  %v911 = vunpack.c.l.b16 %v49
  %v912 = vunpack.c.h.b16 %v49
  %v913 = vunpack.c.l.b16 %v50
  %v914 = vunpack.c.h.b16 %v50
  %v915 = vunpack.c.l.b16 %v51
  %v916 = vunpack.c.h.b16 %v51
  %v917 = vunpack.c.l.b16 %v52
  %v918 = vunpack.c.h.b16 %v52
  %v919 = vunpack.c.l.b16 %v53
  %v920 = vunpack.c.h.b16 %v53
  %v921 = vunpack.c.l.b16 %v54
  %v922 = vunpack.c.h.b16 %v54
  %v923 = vunpack.c.l.b16 %v55
  %v924 = vunpack.c.h.b16 %v55
  %v925 = vunpack.c.l.b16 %v56
  %v926 = vunpack.c.h.b16 %v56
  %v927 = vunpack.c.l.b16 %v57
  %v928 = vunpack.c.h.b16 %v57
  %v929 = vunpack.c.l.b16 %v58
  %v930 = vunpack.c.h.b16 %v58
  %v931 = vunpack.c.l.b16 %v59
  %v932 = vunpack.c.h.b16 %v59
  %v933 = vunpack.c.l.b16 %v60
  %v934 = vunpack.c.h.b16 %v60
  %v935 = vunpack.c.l.b16 %v61
  %v936 = vunpack.c.h.b16 %v61
  %v937 = vunpack.c.l.b16 %v62
  %v938 = vunpack.c.h.b16 %v62
  %v939 = vunpack.c.l.b16 %v63
  %v940 = vunpack.c.h.b16 %v63
  %v941 = vunpack.c.l.b16 %v64
  %v942 = vunpack.c.h.b16 %v64
  %v943 = vunpack.c.l.b16 %v65
  %v944 = vunpack.c.h.b16 %v65
  %v945 = vunpack.c.l.b16 %v66
  %v946 = vunpack.c.h.b16 %v66
  %v947 = vunpack.c.l.b16 %v67
  %v948 = vunpack.c.h.b16 %v67
  %v949 = vunpack.c.l.b16 %v68
  %v950 = vunpack.c.h.b16 %v68
  %v951 = vunpack.c.l.b16 %v69
  %v952 = vunpack.c.h.b16 %v69
  %v953 = vunpack.c.l.b16 %v70
  %v954 = vunpack.c.h.b16 %v70
  %v955 = vunpack.c.l.b16 %v71
  %v956 = vunpack.c.h.b16 %v71
  %v957 = vunpack.c.l.b16 %v72
  %v958 = vunpack.c.h.b16 %v72
  %v959 = vunpack.c.l.b16 %v73
  %v960 = vunpack.c.h.b16 %v73
  %v961 = vunpack.c.l.b16 %v74
  %v962 = vunpack.c.h.b16 %v74
  %v963 = vunpack.c.l.b16 %v75
  %v964 = vunpack.c.h.b16 %v75
  %v965 = vunpack.c.l.b16 %v76
  %v966 = vunpack.c.h.b16 %v76
  %v967 = vunpack.c.l.b16 %v77
  %v968 = vunpack.c.h.b16 %v77
  %v969 = vunpack.c.l.b16 %v78
  %v970 = vunpack.c.h.b16 %v78
  %v971 = vunpack.c.l.b16 %v79
  %v972 = vunpack.c.h.b16 %v79
  %v973 = vunpack.c.l.b16 %v80
  %v974 = vunpack.c.h.b16 %v80
  %v975 = vunpack.c.l.b16 %v81
  %v976 = vunpack.c.h.b16 %v81
  %v977 = vunpack.c.l.b16 %v82
  %v978 = vunpack.c.h.b16 %v82
  %v979 = vunpack.c.l.b16 %v83
  %v980 = vunpack.c.h.b16 %v83
  %v981 = vunpack.c.l.b16 %v84
  %v982 = vunpack.c.h.b16 %v84
  %v983 = vunpack.c.l.b16 %v85
  %v984 = vunpack.c.h.b16 %v85
  %v985 = vunpack.c.l.b16 %v86
  %v986 = vunpack.c.h.b16 %v86
  %v987 = vunpack.c.l.b16 %v87
  %v988 = vunpack.c.h.b16 %v87
  %v989 = vunpack.c.l.b16 %v88
  %v990 = vunpack.c.h.b16 %v88
  %v991 = vunpack.c.l.b16 %v89
  %v992 = vunpack.c.h.b16 %v89
  %v993 = vunpack.c.l.b16 %v90
  %v994 = vunpack.c.h.b16 %v90
  %v995 = vunpack.c.l.b16 %v91
  %v996 = vunpack.c.h.b16 %v91
  %v997 = vunpack.c.l.b16 %v92
  %v998 = vunpack.c.h.b16 %v92
  %v999 = vunpack.c.l.b16 %v93
  %v1000 = vunpack.c.h.b16 %v93
  %v1001 = vunpack.c.l.b16 %v94
  %v1002 = vunpack.c.h.b16 %v94
  %v1003 = vunpack.c.l.b16 %v95
  %v1004 = vunpack.c.h.b16 %v95
  %v1005 = vunpack.c.l.b16 %v96
  %v1006 = vunpack.c.h.b16 %v96
  %v1007 = vunpack.c.l.b16 %v97
  %v1008 = vunpack.c.h.b16 %v97
  %v1009 = vunpack.c.l.b16 %v98
  %v1010 = vunpack.c.h.b16 %v98
  %v1011 = vunpack.c.l.b16 %v99
  %v1012 = vunpack.c.h.b16 %v99
  %v1013 = vunpack.c.l.b16 %v100
  %v1014 = vunpack.c.h.b16 %v100
  %v1015 = vunpack.c.l.b16 %v101
  %v1016 = vunpack.c.h.b16 %v101
  %v1017 = vunpack.c.l.b16 %v102
  %v1018 = vunpack.c.h.b16 %v102
  %v1019 = vunpack.c.l.b16 %v103
  %v1020 = vunpack.c.h.b16 %v103
  %v1021 = vunpack.c.l.b16 %v104
  %v1022 = vunpack.c.h.b16 %v104
  %v1023 = vunpack.c.l.b16 %v105
  %v1024 = vunpack.c.h.b16 %v105
  %v1025 = vunpack.c.l.b16 %v106
  %v1026 = vunpack.c.h.b16 %v106
  %v1027 = vunpack.c.l.b16 %v107
  %v1028 = vunpack.c.h.b16 %v107
  %v1029 = vunpack.c.l.b16 %v108
  %v1030 = vunpack.c.h.b16 %v108
  %v1031 = vunpack.c.l.b16 %v109
  %v1032 = vunpack.c.h.b16 %v109
  %v1033 = vunpack.c.l.b16 %v110
  %v1034 = vunpack.c.h.b16 %v110
  %v1035 = vunpack.c.l.b16 %v111
  %v1036 = vunpack.c.h.b16 %v111
  %v1037 = vunpack.c.l.b16 %v112
  %v1038 = vunpack.c.h.b16 %v112
  %v1039 = vunpack.c.l.b16 %v113
  %v1040 = vunpack.c.h.b16 %v113
  %v1041 = vunpack.c.l.b16 %v114
  %v1042 = vunpack.c.h.b16 %v114
  %v1043 = vunpack.c.l.b16 %v115
  %v1044 = vunpack.c.h.b16 %v115
  %v1045 = vunpack.c.l.b16 %v116
  %v1046 = vunpack.c.h.b16 %v116
  %v1047 = vunpack.c.l.b16 %v117
  %v1048 = vunpack.c.h.b16 %v117
  %v1049 = vunpack.c.l.b16 %v118
  %v1050 = vunpack.c.h.b16 %v118
  %v1051 = vunpack.c.l.b16 %v119
  %v1052 = vunpack.c.h.b16 %v119
  %v1053 = vunpack.c.l.b16 %v120
  %v1054 = vunpack.c.h.b16 %v120
  %v1055 = vunpack.c.l.b16 %v121
  %v1056 = vunpack.c.h.b16 %v121
  %v1057 = vunpack.c.l.b16 %v122
  %v1058 = vunpack.c.h.b16 %v122
  %v1059 = vunpack.c.l.b16 %v123
  %v1060 = vunpack.c.h.b16 %v123
  %v1061 = vunpack.c.l.b16 %v124
  %v1062 = vunpack.c.h.b16 %v124
  %v1063 = vunpack.c.l.b16 %v125
  %v1064 = vunpack.c.h.b16 %v125
  %v1065 = vunpack.c.l.b16 %v126
  %v1066 = vunpack.c.h.b16 %v126
  %v1067 = vunpack.c.l.b16 %v127
  %v1068 = vunpack.c.h.b16 %v127
  %v1069 = vunpack.c.l.b16 %v128
  %v1070 = vunpack.c.h.b16 %v128
  %v1071 = vunpack.c.l.b16 %v129
  %v1072 = vunpack.c.h.b16 %v129
  %v1073 = vunpack.c.l.b16 %v130
  %v1074 = vunpack.c.h.b16 %v130
  %v1075 = vunpack.c.l.b16 %v131
  %v1076 = vunpack.c.h.b16 %v131
  %v1077 = vunpack.c.l.b16 %v132
  %v1078 = vunpack.c.h.b16 %v132
  %v1079 = vunpack.c.l.b16 %v133
  %v1080 = vunpack.c.h.b16 %v133
  %v1081 = vunpack.c.l.b16 %v134
  %v1082 = vunpack.c.h.b16 %v134
  %v1083 = vunpack.c.l.b16 %v135
  %v1084 = vunpack.c.h.b16 %v135
  %v1085 = vunpack.c.l.b16 %v136
  %v1086 = vunpack.c.h.b16 %v136
  %v1087 = vunpack.c.l.b16 %v137
  %v1088 = vunpack.c.h.b16 %v137
  %v1089 = vunpack.c.l.b16 %v138
  %v1090 = vunpack.c.h.b16 %v138
  %v1091 = vunpack.c.l.b16 %v139
  %v1092 = vunpack.c.h.b16 %v139
  %v1093 = vunpack.c.l.b16 %v140
  %v1094 = vunpack.c.h.b16 %v140
  %v1095 = vunpack.c.l.b16 %v141
  %v1096 = vunpack.c.h.b16 %v141
  %v1097 = vunpack.c.l.b16 %v142
  %v1098 = vunpack.c.h.b16 %v142
  %v1099 = vunpack.c.l.b16 %v143
  %v1100 = vunpack.c.h.b16 %v143
  %v1101 = vunpack.c.l.b16 %v144
  %v1102 = vunpack.c.h.b16 %v144
  %v1103 = vunpack.c.l.b16 %v145
  %v1104 = vunpack.c.h.b16 %v145
  %v1105 = vunpack.c.l.b16 %v146
  %v1106 = vunpack.c.h.b16 %v146
  %v1107 = vunpack.c.l.b16 %v147
  %v1108 = vunpack.c.h.b16 %v147
  %v1109 = vunpack.c.l.b16 %v148
  %v1110 = vunpack.c.h.b16 %v148
  %v1111 = vunpack.c.l.b16 %v149
  %v1112 = vunpack.c.h.b16 %v149
  %v1113 = vunpack.c.l.b16 %v150
  %v1114 = vunpack.c.h.b16 %v150
  %v1115 = vunpack.c.l.b16 %v151
  %v1116 = vunpack.c.h.b16 %v151
  %v1117 = vunpack.c.l.b16 %v152
  %v1118 = vunpack.c.h.b16 %v152
  %v1119 = vunpack.c.l.b16 %v153
  %v1120 = vunpack.c.h.b16 %v153
  %v1121 = vunpack.c.l.b16 %v154
  %v1122 = vunpack.c.h.b16 %v154
  %v1123 = vunpack.c.l.b16 %v155
  %v1124 = vunpack.c.h.b16 %v155
  %v1125 = vunpack.c.l.b16 %v156
  %v1126 = vunpack.c.h.b16 %v156
  %v1127 = vunpack.c.l.b16 %v157
  %v1128 = vunpack.c.h.b16 %v157
  %v1129 = vunpack.c.l.b16 %v158
  %v1130 = vunpack.c.h.b16 %v158
  %v1131 = vunpack.c.l.b16 %v159
  %v1132 = vunpack.c.h.b16 %v159
  %v1133 = vunpack.c.l.b16 %v160
  %v1134 = vunpack.c.h.b16 %v160
  %v1135 = vunpack.c.l.b16 %v161
  %v1136 = vunpack.c.h.b16 %v161
  %v1137 = vunpack.c.l.b16 %v162
  %v1138 = vunpack.c.h.b16 %v162
  %v1139 = vunpack.c.l.b16 %v163
  %v1140 = vunpack.c.h.b16 %v163
  %v1141 = vunpack.c.l.b16 %v164
  %v1142 = vunpack.c.h.b16 %v164
  %v1143 = vunpack.c.l.b16 %v165
  %v1144 = vunpack.c.h.b16 %v165
  %v1145 = vunpack.c.l.b16 %v166
  %v1146 = vunpack.c.h.b16 %v166
  %v1147 = vunpack.c.l.b16 %v167
  %v1148 = vunpack.c.h.b16 %v167
  %v1149 = vunpack.c.l.b16 %v168
  %v1150 = vunpack.c.h.b16 %v168
  %v1151 = vunpack.c.l.b16 %v169
  %v1152 = vunpack.c.h.b16 %v169
  %v1153 = vunpack.c.l.b16 %v170
  %v1154 = vunpack.c.h.b16 %v170
  %v1155 = vunpack.c.l.b16 %v171
  %v1156 = vunpack.c.h.b16 %v171
  %v1157 = vunpack.c.l.b16 %v172
  %v1158 = vunpack.c.h.b16 %v172
  %v1159 = vunpack.c.l.b16 %v173
  %v1160 = vunpack.c.h.b16 %v173
  %v1161 = vunpack.c.l.b16 %v174
  %v1162 = vunpack.c.h.b16 %v174
  %v1163 = vunpack.c.l.b16 %v175
  %v1164 = vunpack.c.h.b16 %v175
  %v1165 = vunpack.c.l.b16 %v176
  %v1166 = vunpack.c.h.b16 %v176
  %v1167 = vunpack.c.l.b16 %v177
  %v1168 = vunpack.c.h.b16 %v177
  %v1169 = vunpack.c.l.b16 %v178
  %v1170 = vunpack.c.h.b16 %v178
  %v1171 = vunpack.c.l.b16 %v179
  %v1172 = vunpack.c.h.b16 %v179
  %v1173 = vunpack.c.l.b16 %v180
  %v1174 = vunpack.c.h.b16 %v180
  %v1175 = vunpack.c.l.b16 %v181
  %v1176 = vunpack.c.h.b16 %v181
  %v1177 = vunpack.c.l.b16 %v182
  %v1178 = vunpack.c.h.b16 %v182
  %v1179 = vunpack.c.l.b16 %v183
  %v1180 = vunpack.c.h.b16 %v183
  %v1181 = vunpack.c.l.b16 %v184
  %v1182 = vunpack.c.h.b16 %v184
  %v1183 = vunpack.c.l.b16 %v185
  %v1184 = vunpack.c.h.b16 %v185
  %v1185 = vunpack.c.l.b16 %v186
  %v1186 = vunpack.c.h.b16 %v186
  %v1187 = vunpack.c.l.b16 %v187
  %v1188 = vunpack.c.h.b16 %v187
  %v1189 = vunpack.c.l.b16 %v188
  %v1190 = vunpack.c.h.b16 %v188
  %v1191 = vunpack.c.l.b16 %v189
  %v1192 = vunpack.c.h.b16 %v189
  %v1193 = vunpack.c.l.b16 %v190
  %v1194 = vunpack.c.h.b16 %v190
  %v1195 = vunpack.c.l.b16 %v191
  %v1196 = vunpack.c.h.b16 %v191
  %v1197 = vunpack.c.l.b16 %v192
  %v1198 = vunpack.c.h.b16 %v192
  %v1199 = vunpack.c.l.b16 %v193
  %v1200 = vunpack.c.h.b16 %v193
  %v1201 = vunpack.c.l.b16 %v194
  %v1202 = vunpack.c.h.b16 %v194
  %v1203 = vunpack.c.l.b16 %v195
  %v1204 = vunpack.c.h.b16 %v195
  %v1205 = vunpack.c.l.b16 %v196
  %v1206 = vunpack.c.h.b16 %v196
  %v1207 = vunpack.c.l.b16 %v197
  %v1208 = vunpack.c.h.b16 %v197
  %v1209 = vunpack.c.l.b16 %v198
  %v1210 = vunpack.c.h.b16 %v198
  %v1211 = vunpack.c.l.b16 %v199
  %v1212 = vunpack.c.h.b16 %v199
  %v1213 = vunpack.c.l.b16 %v200
  %v1214 = vunpack.c.h.b16 %v200
  %v1215 = vunpack.c.l.b16 %v201
  %v1216 = vunpack.c.h.b16 %v201
  %v1217 = vunpack.c.l.b16 %v202
  %v1218 = vunpack.c.h.b16 %v202
  %v1219 = vunpack.c.l.b16 %v203
  %v1220 = vunpack.c.h.b16 %v203
  %v1221 = vunpack.c.l.b16 %v204
  %v1222 = vunpack.c.h.b16 %v204
  %v1223 = vunpack.c.l.b16 %v205
  %v1224 = vunpack.c.h.b16 %v205
  %v1225 = vunpack.c.l.b16 %v206
  %v1226 = vunpack.c.h.b16 %v206
  %v1227 = vunpack.c.l.b16 %v207
  %v1228 = vunpack.c.h.b16 %v207
  %v1229 = vunpack.c.l.b16 %v208
  %v1230 = vunpack.c.h.b16 %v208
  %v1231 = vunpack.c.l.b16 %v209
  %v1232 = vunpack.c.h.b16 %v209
  %v1233 = vunpack.c.l.b16 %v210
  %v1234 = vunpack.c.h.b16 %v210
  %v1235 = vunpack.c.l.b16 %v211
  %v1236 = vunpack.c.h.b16 %v211
  %v1237 = vunpack.c.l.b16 %v212
  %v1238 = vunpack.c.h.b16 %v212
  %v1239 = vunpack.c.l.b16 %v213
  %v1240 = vunpack.c.h.b16 %v213
  %v1241 = vunpack.c.l.b16 %v214
  %v1242 = vunpack.c.h.b16 %v214
  %v1243 = vunpack.c.l.b16 %v215
  %v1244 = vunpack.c.h.b16 %v215
  %v1245 = vunpack.c.l.b16 %v216
  %v1246 = vunpack.c.h.b16 %v216
  %v1247 = vunpack.c.l.b16 %v217
  %v1248 = vunpack.c.h.b16 %v217
  %v1249 = vunpack.c.l.b16 %v218
  %v1250 = vunpack.c.h.b16 %v218
  %v1251 = vunpack.c.l.b16 %v219
  %v1252 = vunpack.c.h.b16 %v219
  %v1253 = vunpack.c.l.b16 %v220
  %v1254 = vunpack.c.h.b16 %v220
  %v1255 = vunpack.c.l.b16 %v221
  %v1256 = vunpack.c.h.b16 %v221
  %v1257 = vunpack.c.l.b16 %v222
  %v1258 = vunpack.c.h.b16 %v222
  %v1259 = vunpack.c.l.b16 %v223
  %v1260 = vunpack.c.h.b16 %v223
  %v1261 = vunpack.c.l.b16 %v224
  %v1262 = vunpack.c.h.b16 %v224
  %v1263 = vunpack.c.l.b16 %v225
  %v1264 = vunpack.c.h.b16 %v225
  %v1265 = vunpack.c.l.b16 %v226
  %v1266 = vunpack.c.h.b16 %v226
  %v1267 = vunpack.c.l.b16 %v227
  %v1268 = vunpack.c.h.b16 %v227
  %v1269 = vunpack.c.l.b16 %v228
  %v1270 = vunpack.c.h.b16 %v228
  %v1271 = vunpack.c.l.b16 %v229
  %v1272 = vunpack.c.h.b16 %v229
  %v1273 = vunpack.c.l.b16 %v230
  %v1274 = vunpack.c.h.b16 %v230
  %v1275 = vunpack.c.l.b16 %v231
  %v1276 = vunpack.c.h.b16 %v231
  %v1277 = vunpack.c.l.b16 %v232
  %v1278 = vunpack.c.h.b16 %v232
  %v1279 = vunpack.c.l.b16 %v233
  %v1280 = vunpack.c.h.b16 %v233
  %v1281 = vunpack.c.l.b16 %v234
  %v1282 = vunpack.c.h.b16 %v234
  %v1283 = vunpack.c.l.b16 %v235
  %v1284 = vunpack.c.h.b16 %v235
  %v1285 = vunpack.c.l.b16 %v236
  %v1286 = vunpack.c.h.b16 %v236
  %v1287 = vunpack.c.l.b16 %v237
  %v1288 = vunpack.c.h.b16 %v237
  %v1289 = vunpack.c.l.b16 %v238
  %v1290 = vunpack.c.h.b16 %v238
  %v1291 = vunpack.c.l.b16 %v239
  %v1292 = vunpack.c.h.b16 %v239
  %v1293 = vunpack.c.l.b16 %v240
  %v1294 = vunpack.c.h.b16 %v240
  %v1295 = vunpack.c.l.b16 %v241
  %v1296 = vunpack.c.h.b16 %v241
  %v1297 = vunpack.c.l.b16 %v242
  %v1298 = vunpack.c.h.b16 %v242
  %v1299 = vunpack.c.l.b16 %v243
  %v1300 = vunpack.c.h.b16 %v243
  %v1301 = vunpack.c.l.b16 %v244
  %v1302 = vunpack.c.h.b16 %v244
  %v1303 = vunpack.c.l.b16 %v245
  %v1304 = vunpack.c.h.b16 %v245
  %v1305 = vunpack.c.l.b16 %v246
  %v1306 = vunpack.c.h.b16 %v246
  %v1307 = vunpack.c.l.b16 %v247
  %v1308 = vunpack.c.h.b16 %v247
  %v1309 = vunpack.c.l.b16 %v248
  %v1310 = vunpack.c.h.b16 %v248
  %v1311 = vunpack.c.l.b16 %v249
  %v1312 = vunpack.c.h.b16 %v249
  %v1313 = vunpack.c.l.b16 %v250
  %v1314 = vunpack.c.h.b16 %v250
  %v1315 = vunpack.c.l.b16 %v251
  %v1316 = vunpack.c.h.b16 %v251
  %v1317 = vunpack.c.l.b16 %v252
  %v1318 = vunpack.c.h.b16 %v252
  %v1319 = vunpack.c.l.b16 %v253
  %v1320 = vunpack.c.h.b16 %v253
  %v1321 = vunpack.c.l.b16 %v254
  %v1322 = vunpack.c.h.b16 %v254
  %v1323 = vunpack.c.l.b16 %v255
  %v1324 = vunpack.c.h.b16 %v255
  %v1325 = vunpack.c.l.b16 %v256
  %v1326 = vunpack.c.h.b16 %v256
  %v1327 = vunpack.c.l.b16 %v257
  %v1328 = vunpack.c.h.b16 %v257
  %v1329 = vunpack.c.l.b16 %v258
  %v1330 = vunpack.c.h.b16 %v258
  %v1331 = vunpack.c.l.b16 %v259
  %v1332 = vunpack.c.h.b16 %v259
  %v1333 = vunpack.c.l.b16 %v260
  %v1334 = vunpack.c.h.b16 %v260
  %v1335 = vunpack.c.l.b16 %v261
  %v1336 = vunpack.c.h.b16 %v261
  %v1337 = vunpack.c.l.b16 %v262
  %v1338 = vunpack.c.h.b16 %v262
  %v1339 = vunpack.c.l.b16 %v263
  %v1340 = vunpack.c.h.b16 %v263
  %v1341 = vunpack.c.l.b16 %v264
  %v1342 = vunpack.c.h.b16 %v264
  %v1343 = vunpack.c.l.b16 %v265
  %v1344 = vunpack.c.h.b16 %v265
  %v1345 = vunpack.c.l.b16 %v266
  %v1346 = vunpack.c.h.b16 %v266
  %v1347 = vunpack.c.l.b16 %v267
  %v1348 = vunpack.c.h.b16 %v267
  %v1349 = vunpack.c.l.b16 %v268
  %v1350 = vunpack.c.h.b16 %v268
  %v1351 = vunpack.c.l.b16 %v269
  %v1352 = vunpack.c.h.b16 %v269
  %v1353 = vunpack.c.l.b16 %v270
  %v1354 = vunpack.c.h.b16 %v270
  %v1355 = vunpack.c.l.b16 %v271
  %v1356 = vunpack.c.h.b16 %v271
  %v1357 = vunpack.c.l.b16 %v272
  %v1358 = vunpack.c.h.b16 %v272
  %v1359 = vunpack.c.l.b16 %v273
  %v1360 = vunpack.c.h.b16 %v273
  %v1361 = vunpack.c.l.b16 %v274
  %v1362 = vunpack.c.h.b16 %v274
  %v1363 = vunpack.c.l.b16 %v275
  %v1364 = vunpack.c.h.b16 %v275
  %v1365 = vunpack.c.l.b16 %v276
  %v1366 = vunpack.c.h.b16 %v276
  %v1367 = vunpack.c.l.b16 %v277
  %v1368 = vunpack.c.h.b16 %v277
  %v1369 = vunpack.c.l.b16 %v278
  %v1370 = vunpack.c.h.b16 %v278
  %v1371 = vunpack.c.l.b16 %v279
  %v1372 = vunpack.c.h.b16 %v279
  %v1373 = vunpack.c.l.b16 %v280
  %v1374 = vunpack.c.h.b16 %v280
  %v1375 = vunpack.c.l.b16 %v281
  %v1376 = vunpack.c.h.b16 %v281
  %v1377 = vunpack.c.l.b16 %v282
  %v1378 = vunpack.c.h.b16 %v282
  %v1379 = vunpack.c.l.b16 %v283
  %v1380 = vunpack.c.h.b16 %v283
  %v1381 = vunpack.c.l.b16 %v284
  %v1382 = vunpack.c.h.b16 %v284
  %v1383 = vunpack.c.l.b16 %v285
  %v1384 = vunpack.c.h.b16 %v285
  %v1385 = vunpack.c.l.b16 %v286
  %v1386 = vunpack.c.h.b16 %v286
  %v1387 = vunpack.c.l.b16 %v287
  %v1388 = vunpack.c.h.b16 %v287
  %v1389 = vunpack.c.l.b16 %v288
  %v1390 = vunpack.c.h.b16 %v288
  %v1391 = vunpack.c.l.b16 %v289
  %v1392 = vunpack.c.h.b16 %v289
  %v1393 = vunpack.c.l.b16 %v290
  %v1394 = vunpack.c.h.b16 %v290
  %v1395 = vunpack.c.l.b16 %v291
  %v1396 = vunpack.c.h.b16 %v291
  %v1397 = vunpack.c.l.b16 %v292
  %v1398 = vunpack.c.h.b16 %v292
  %v1399 = vunpack.c.l.b16 %v293
  %v1400 = vunpack.c.h.b16 %v293
  %v1401 = vunpack.c.l.b16 %v294
  %v1402 = vunpack.c.h.b16 %v294
  %v1403 = vunpack.c.l.b16 %v295
  %v1404 = vunpack.c.h.b16 %v295
  %v1405 = vunpack.c.l.b16 %v296
  %v1406 = vunpack.c.h.b16 %v296
  %v1407 = vunpack.c.l.b16 %v297
  %v1408 = vunpack.c.h.b16 %v297
  %v1409 = vunpack.c.l.b16 %v298
  %v1410 = vunpack.c.h.b16 %v298
  %v1411 = vunpack.c.l.b16 %v299
  %v1412 = vunpack.c.h.b16 %v299
  %v1413 = vunpack.c.l.b16 %v300
  %v1414 = vunpack.c.h.b16 %v300
  %v1415 = vunpack.c.l.b16 %v301
  %v1416 = vunpack.c.h.b16 %v301
  %v1417 = vunpack.c.l.b16 %v302
  %v1418 = vunpack.c.h.b16 %v302
  %v1419 = vunpack.c.l.b16 %v303
  %v1420 = vunpack.c.h.b16 %v303
  %v1421 = vunpack.c.l.b16 %v304
  %v1422 = vunpack.c.h.b16 %v304
  %v1423 = vunpack.c.l.b16 %v305
  %v1424 = vunpack.c.h.b16 %v305
  %v1425 = vunpack.c.l.b16 %v306
  %v1426 = vunpack.c.h.b16 %v306
  %v1427 = vunpack.c.l.b16 %v307
  %v1428 = vunpack.c.h.b16 %v307
  %v1429 = vunpack.c.l.b16 %v308
  %v1430 = vunpack.c.h.b16 %v308
  %v1431 = vunpack.c.l.b16 %v309
  %v1432 = vunpack.c.h.b16 %v309
  %v1433 = vunpack.c.l.b16 %v310
  %v1434 = vunpack.c.h.b16 %v310
  %v1435 = vunpack.c.l.b16 %v311
  %v1436 = vunpack.c.h.b16 %v311
  %v1437 = vunpack.c.l.b16 %v312
  %v1438 = vunpack.c.h.b16 %v312
  %v1439 = vunpack.c.l.b16 %v313
  %v1440 = vunpack.c.h.b16 %v313
  %v1441 = vunpack.c.l.b16 %v314
  %v1442 = vunpack.c.h.b16 %v314
  %v1443 = vunpack.c.l.b16 %v315
  %v1444 = vunpack.c.h.b16 %v315
  %v1445 = vunpack.c.l.b16 %v316
  %v1446 = vunpack.c.h.b16 %v316
  %v1447 = vunpack.c.l.b16 %v317
  %v1448 = vunpack.c.h.b16 %v317
  %v1449 = vunpack.c.l.b16 %v318
  %v1450 = vunpack.c.h.b16 %v318
  %v1451 = vunpack.c.l.b16 %v319
  %v1452 = vunpack.c.h.b16 %v319
  %v1453 = vunpack.c.l.b16 %v320
  %v1454 = vunpack.c.h.b16 %v320
  %v1455 = vunpack.c.l.b16 %v321
  %v1456 = vunpack.c.h.b16 %v321
  %v1457 = vunpack.c.l.b16 %v322
  %v1458 = vunpack.c.h.b16 %v322
  %v1459 = vunpack.c.l.b16 %v323
  %v1460 = vunpack.c.h.b16 %v323
  %v1461 = vunpack.c.l.b16 %v324
  %v1462 = vunpack.c.h.b16 %v324
  %v1463 = vunpack.c.l.b16 %v325
  %v1464 = vunpack.c.h.b16 %v325
  %v1465 = vunpack.c.l.b16 %v326
  %v1466 = vunpack.c.h.b16 %v326
  %v1467 = vunpack.c.l.b16 %v327
  %v1468 = vunpack.c.h.b16 %v327
  %v1469 = vunpack.c.l.b16 %v328
  %v1470 = vunpack.c.h.b16 %v328
  %v1471 = vunpack.c.l.b16 %v329
  %v1472 = vunpack.c.h.b16 %v329
  %v1473 = vunpack.c.l.b16 %v330
  %v1474 = vunpack.c.h.b16 %v330
  %v1475 = vunpack.c.l.b16 %v331
  %v1476 = vunpack.c.h.b16 %v331
  %v1477 = vunpack.c.l.b16 %v332
  %v1478 = vunpack.c.h.b16 %v332
  %v1479 = vunpack.c.l.b16 %v333
  %v1480 = vunpack.c.h.b16 %v333
  %v1481 = vunpack.c.l.b16 %v334
  %v1482 = vunpack.c.h.b16 %v334
  %v1483 = vunpack.c.l.b16 %v335
  %v1484 = vunpack.c.h.b16 %v335
  %v1485 = vunpack.c.l.b16 %v336
  %v1486 = vunpack.c.h.b16 %v336
  %v1487 = vunpack.c.l.b16 %v337
  %v1488 = vunpack.c.h.b16 %v337
  %v1489 = vunpack.c.l.b16 %v338
  %v1490 = vunpack.c.h.b16 %v338
  %v1491 = vunpack.c.l.b16 %v339
  %v1492 = vunpack.c.h.b16 %v339
  %v1493 = vunpack.c.l.b16 %v340
  %v1494 = vunpack.c.h.b16 %v340
  %v1495 = vunpack.c.l.b16 %v341
  %v1496 = vunpack.c.h.b16 %v341
  %v1497 = vunpack.c.l.b16 %v342
  %v1498 = vunpack.c.h.b16 %v342
  %v1499 = vunpack.c.l.b16 %v343
  %v1500 = vunpack.c.h.b16 %v343
  %v1501 = vunpack.c.l.b16 %v344
  %v1502 = vunpack.c.h.b16 %v344
  %v1503 = vunpack.c.l.b16 %v345
  %v1504 = vunpack.c.h.b16 %v345
  %v1505 = vunpack.c.l.b16 %v346
  %v1506 = vunpack.c.h.b16 %v346
  %v1507 = vunpack.c.l.b16 %v347
  %v1508 = vunpack.c.h.b16 %v347
  %v1509 = vunpack.c.l.b16 %v348
  %v1510 = vunpack.c.h.b16 %v348
  %v1511 = vunpack.c.l.b16 %v349
  %v1512 = vunpack.c.h.b16 %v349
  %v1513 = vunpack.c.l.b16 %v350
  %v1514 = vunpack.c.h.b16 %v350
  %v1515 = vunpack.c.l.b16 %v351
  %v1516 = vunpack.c.h.b16 %v351
  %v1517 = vunpack.c.l.b16 %v352
  %v1518 = vunpack.c.h.b16 %v352
  %v1519 = vunpack.c.l.b16 %v353
  %v1520 = vunpack.c.h.b16 %v353
  %v1521 = vunpack.c.l.b16 %v354
  %v1522 = vunpack.c.h.b16 %v354
  %v1523 = vunpack.c.l.b16 %v355
  %v1524 = vunpack.c.h.b16 %v355
  %v1525 = vunpack.c.l.b16 %v356
  %v1526 = vunpack.c.h.b16 %v356
  %v1527 = vunpack.c.l.b16 %v357
  %v1528 = vunpack.c.h.b16 %v357
  %v1529 = vunpack.c.l.b16 %v358
  %v1530 = vunpack.c.h.b16 %v358
  %v1531 = vunpack.c.l.b16 %v359
  %v1532 = vunpack.c.h.b16 %v359
  %v1533 = vunpack.c.l.b16 %v360
  %v1534 = vunpack.c.h.b16 %v360
  %v1535 = vunpack.c.l.b16 %v361
  %v1536 = vunpack.c.h.b16 %v361
  %v1537 = vunpack.c.l.b16 %v362
  %v1538 = vunpack.c.h.b16 %v362
  %v1539 = vunpack.c.l.b16 %v363
  %v1540 = vunpack.c.h.b16 %v363
  %v1541 = vunpack.c.l.b16 %v364
  %v1542 = vunpack.c.h.b16 %v364
  %v1543 = vunpack.c.l.b16 %v365
  %v1544 = vunpack.c.h.b16 %v365
  %v1545 = vunpack.c.l.b16 %v366
  %v1546 = vunpack.c.h.b16 %v366
  %v1547 = vunpack.c.l.b16 %v367
  %v1548 = vunpack.c.h.b16 %v367
  %v1549 = vunpack.c.l.b16 %v368
  %v1550 = vunpack.c.h.b16 %v368
  %v1551 = vunpack.c.l.b16 %v369
  %v1552 = vunpack.c.h.b16 %v369
  %v1553 = vunpack.c.l.b16 %v370
  %v1554 = vunpack.c.h.b16 %v370
  %v1555 = vunpack.c.l.b16 %v371
  %v1556 = vunpack.c.h.b16 %v371
  %v1557 = vunpack.c.l.b16 %v372
  %v1558 = vunpack.c.h.b16 %v372
  %v1559 = vunpack.c.l.b16 %v373
  %v1560 = vunpack.c.h.b16 %v373
  %v1561 = vunpack.c.l.b16 %v374
  %v1562 = vunpack.c.h.b16 %v374
  %v1563 = vunpack.c.l.b16 %v375
  %v1564 = vunpack.c.h.b16 %v375
  %v1565 = vunpack.c.l.b16 %v376
  %v1566 = vunpack.c.h.b16 %v376
  %v1567 = vunpack.c.l.b16 %v377
  %v1568 = vunpack.c.h.b16 %v377
  %v1569 = vunpack.c.l.b16 %v378
  %v1570 = vunpack.c.h.b16 %v378
  %v1571 = vunpack.c.l.b16 %v379
  %v1572 = vunpack.c.h.b16 %v379
  %v1573 = vunpack.c.l.b16 %v380
  %v1574 = vunpack.c.h.b16 %v380
  %v1575 = vunpack.c.l.b16 %v381
  %v1576 = vunpack.c.h.b16 %v381
  %v1577 = vunpack.c.l.b16 %v382
  %v1578 = vunpack.c.h.b16 %v382
  %v1579 = vunpack.c.l.b16 %v383
  %v1580 = vunpack.c.h.b16 %v383
  %v1581 = vunpack.c.l.b16 %v384
  %v1582 = vunpack.c.h.b16 %v384
  %v1583 = vunpack.c.l.b16 %v385
  %v1584 = vunpack.c.h.b16 %v385
  %v1585 = vunpack.c.l.b16 %v386
  %v1586 = vunpack.c.h.b16 %v386
  %v1587 = vunpack.c.l.b16 %v387
  %v1588 = vunpack.c.h.b16 %v387
  %v1589 = vunpack.c.l.b16 %v388
  %v1590 = vunpack.c.h.b16 %v388
  %v1591 = vunpack.c.l.b16 %v389
  %v1592 = vunpack.c.h.b16 %v389
  %v1593 = vunpack.c.l.b16 %v390
  %v1594 = vunpack.c.h.b16 %v390
  %v1595 = vunpack.c.l.b16 %v391
  %v1596 = vunpack.c.h.b16 %v391
  %v1597 = vunpack.c.l.b16 %v392
  %v1598 = vunpack.c.h.b16 %v392
  %v1599 = vunpack.c.l.b16 %v393
  %v1600 = vunpack.c.h.b16 %v393
  %v1601 = vunpack.c.l.b16 %v394
  %v1602 = vunpack.c.h.b16 %v394
  %v1603 = vunpack.c.l.b16 %v395
  %v1604 = vunpack.c.h.b16 %v395
  %v1605 = vunpack.c.l.b16 %v396
  %v1606 = vunpack.c.h.b16 %v396
  %v1607 = vunpack.c.l.b16 %v397
  %v1608 = vunpack.c.h.b16 %v397
  %v1609 = vunpack.c.l.b16 %v398
  %v1610 = vunpack.c.h.b16 %v398
  %v1611 = vunpack.c.l.b16 %v399
  %v1612 = vunpack.c.h.b16 %v399
  %v1613 = vunpack.c.l.b16 %v400
  %v1614 = vunpack.c.h.b16 %v400
  %v1615 = vunpack.c.l.b16 %v401
  %v1616 = vunpack.c.h.b16 %v401
  %v1617 = vunpack.c.l.b16 %v402
  %v1618 = vunpack.c.h.b16 %v402
  %v1619 = vunpack.c.l.b16 %v403
  %v1620 = vunpack.c.h.b16 %v403
  %v1621 = vunpack.c.l.b16 %v404
  %v1622 = vunpack.c.h.b16 %v404
  %v1623 = vunpack.c.l.b16 %v405
  %v1624 = vunpack.c.h.b16 %v405
  %v1625 = vunpack.c.l.b16 %v406
  %v1626 = vunpack.c.h.b16 %v406
  %v1627 = vunpack.c.l.b16 %v407
  %v1628 = vunpack.c.h.b16 %v407
  %v1629 = vunpack.c.l.b16 %v408
  %v1630 = vunpack.c.h.b16 %v408
  %v1631 = vunpack.c.l.b16 %v409
  %v1632 = vunpack.c.h.b16 %v409
  %v1633 = vunpack.c.l.b16 %v410
  %v1634 = vunpack.c.h.b16 %v410
  %v1635 = vunpack.c.l.b16 %v411
  %v1636 = vunpack.c.h.b16 %v411
  %v1637 = vunpack.c.l.b16 %v412
  %v1638 = vunpack.c.h.b16 %v412
  %v1639 = vunpack.c.l.b16 %v413
  %v1640 = vunpack.c.h.b16 %v413
  %v1641 = vunpack.c.l.b16 %v414
  %v1642 = vunpack.c.h.b16 %v414
  %v1643 = vunpack.c.l.b16 %v415
  %v1644 = vunpack.c.h.b16 %v415
  %v1645 = vunpack.c.l.b16 %v416
  %v1646 = vunpack.c.h.b16 %v416
  %v1647 = vunpack.c.l.b16 %v417
  %v1648 = vunpack.c.h.b16 %v417
  %v1649 = vunpack.c.l.b16 %v418
  %v1650 = vunpack.c.h.b16 %v418
  %v1651 = vunpack.c.l.b16 %v419
  %v1652 = vunpack.c.h.b16 %v419
  %v1653 = vunpack.c.l.b16 %v420
  %v1654 = vunpack.c.h.b16 %v420
  %v1655 = vunpack.c.l.b16 %v421
  %v1656 = vunpack.c.h.b16 %v421
  %v1657 = vunpack.c.l.b16 %v422
  %v1658 = vunpack.c.h.b16 %v422
  %v1659 = vunpack.c.l.b16 %v423
  %v1660 = vunpack.c.h.b16 %v423
  %v1661 = vunpack.c.l.b16 %v424
  %v1662 = vunpack.c.h.b16 %v424
  %v1663 = vunpack.c.l.b16 %v425
  %v1664 = vunpack.c.h.b16 %v425
  %v1665 = vunpack.c.l.b16 %v426
  %v1666 = vunpack.c.h.b16 %v426
  %v1667 = vunpack.c.l.b16 %v427
  %v1668 = vunpack.c.h.b16 %v427
  %v1669 = vunpack.c.l.b16 %v428
  %v1670 = vunpack.c.h.b16 %v428
  %v1671 = vpack.c.b16 %v905, %v903
  %v1672 = vpack.c.b16 %v906, %v904
  %v1673 = vpack.c.b16 %v909, %v907
  %v1674 = vpack.c.b16 %v910, %v908
  %v1675 = vpack.c.b16 %v913, %v911
  %v1676 = vpack.c.b16 %v914, %v912
  %v1677 = vpack.c.b16 %v917, %v915
  %v1678 = vpack.c.b16 %v918, %v916
  %v1679 = vpack.c.b16 %v921, %v919
  %v1680 = vpack.c.b16 %v922, %v920
  %v1681 = vpack.c.b16 %v925, %v923
  %v1682 = vpack.c.b16 %v926, %v924
  %v1683 = vpack.c.b16 %v929, %v927
  %v1684 = vpack.c.b16 %v930, %v928
  %v1685 = vpack.c.b16 %v933, %v931
  %v1686 = vpack.c.b16 %v934, %v932
  %v1687 = vpack.c.b16 %v937, %v935
  %v1688 = vpack.c.b16 %v938, %v936
  %v1689 = vpack.c.b16 %v941, %v939
  %v1690 = vpack.c.b16 %v942, %v940
  %v1691 = vpack.c.b16 %v945, %v943
  %v1692 = vpack.c.b16 %v946, %v944
  %v1693 = vpack.c.b16 %v949, %v947
  %v1694 = vpack.c.b16 %v950, %v948
  %v1695 = vpack.c.b16 %v953, %v951
  %v1696 = vpack.c.b16 %v954, %v952
  %v1697 = vpack.c.b16 %v957, %v955
  %v1698 = vpack.c.b16 %v958, %v956
  %v1699 = vpack.c.b16 %v961, %v959
  %v1700 = vpack.c.b16 %v962, %v960
  %v1701 = vpack.c.b16 %v965, %v963
  %v1702 = vpack.c.b16 %v966, %v964
  %v1703 = vpack.c.b16 %v969, %v967
  %v1704 = vpack.c.b16 %v970, %v968
  %v1705 = vpack.c.b16 %v973, %v971
  %v1706 = vpack.c.b16 %v974, %v972
  %v1707 = vpack.c.b16 %v977, %v975
  %v1708 = vpack.c.b16 %v978, %v976
  %v1709 = vpack.c.b16 %v981, %v979
  %v1710 = vpack.c.b16 %v982, %v980
  %v1711 = vpack.c.b16 %v985, %v983
  %v1712 = vpack.c.b16 %v986, %v984
  %v1713 = vpack.c.b16 %v989, %v987
  %v1714 = vpack.c.b16 %v990, %v988
  %v1715 = vpack.c.b16 %v993, %v991
  %v1716 = vpack.c.b16 %v994, %v992
  %v1717 = vpack.c.b16 %v997, %v995
  %v1718 = vpack.c.b16 %v998, %v996
  %v1719 = vpack.c.b16 %v1001, %v999
  %v1720 = vpack.c.b16 %v1002, %v1000
  %v1721 = vpack.c.b16 %v1005, %v1003
  %v1722 = vpack.c.b16 %v1006, %v1004
  %v1723 = vpack.c.b16 %v1009, %v1007
  %v1724 = vpack.c.b16 %v1010, %v1008
  %v1725 = vpack.c.b16 %v1013, %v1011
  %v1726 = vpack.c.b16 %v1014, %v1012
  %v1727 = vpack.c.b16 %v1017, %v1015
  %v1728 = vpack.c.b16 %v1018, %v1016
  %v1729 = vpack.c.b16 %v1021, %v1019
  %v1730 = vpack.c.b16 %v1022, %v1020
  %v1731 = vpack.c.b16 %v1025, %v1023
  %v1732 = vpack.c.b16 %v1026, %v1024
  %v1733 = vpack.c.b16 %v1029, %v1027
  %v1734 = vpack.c.b16 %v1030, %v1028
  %v1735 = vpack.c.b16 %v1033, %v1031
  %v1736 = vpack.c.b16 %v1034, %v1032
  %v1737 = vpack.c.b16 %v1037, %v1035
  %v1738 = vpack.c.b16 %v1038, %v1036
  %v1739 = vpack.c.b16 %v1041, %v1039
  %v1740 = vpack.c.b16 %v1042, %v1040
  %v1741 = vpack.c.b16 %v1045, %v1043
  %v1742 = vpack.c.b16 %v1046, %v1044
  %v1743 = vpack.c.b16 %v1049, %v1047
  %v1744 = vpack.c.b16 %v1050, %v1048
  %v1745 = vpack.c.b16 %v1053, %v1051
  %v1746 = vpack.c.b16 %v1054, %v1052
  %v1747 = vpack.c.b16 %v1057, %v1055
  %v1748 = vpack.c.b16 %v1058, %v1056
  %v1749 = vpack.c.b16 %v1061, %v1059
  %v1750 = vpack.c.b16 %v1062, %v1060
  %v1751 = vpack.c.b16 %v1065, %v1063
  %v1752 = vpack.c.b16 %v1066, %v1064
  %v1753 = vpack.c.b16 %v1069, %v1067
  %v1754 = vpack.c.b16 %v1070, %v1068
  %v1755 = vpack.c.b16 %v1073, %v1071
  %v1756 = vpack.c.b16 %v1074, %v1072
  %v1757 = vpack.c.b16 %v1077, %v1075
  %v1758 = vpack.c.b16 %v1078, %v1076
  %v1759 = vpack.c.b16 %v1081, %v1079
  %v1760 = vpack.c.b16 %v1082, %v1080
  %v1761 = vpack.c.b16 %v1085, %v1083
  %v1762 = vpack.c.b16 %v1086, %v1084
  %v1763 = vpack.c.b16 %v1089, %v1087
  %v1764 = vpack.c.b16 %v1090, %v1088
  %v1765 = vpack.c.b16 %v1093, %v1091
  %v1766 = vpack.c.b16 %v1094, %v1092
  %v1767 = vpack.c.b16 %v1097, %v1095
  %v1768 = vpack.c.b16 %v1098, %v1096
  %v1769 = vpack.c.b16 %v1101, %v1099
  %v1770 = vpack.c.b16 %v1102, %v1100
  %v1771 = vpack.c.b16 %v1105, %v1103
  %v1772 = vpack.c.b16 %v1106, %v1104
  %v1773 = vpack.c.b16 %v1109, %v1107
  %v1774 = vpack.c.b16 %v1110, %v1108
  %v1775 = vpack.c.b16 %v1113, %v1111
  %v1776 = vpack.c.b16 %v1114, %v1112
  %v1777 = vpack.c.b16 %v1117, %v1115
  %v1778 = vpack.c.b16 %v1118, %v1116
  %v1779 = vpack.c.b16 %v1121, %v1119
  %v1780 = vpack.c.b16 %v1122, %v1120
  %v1781 = vpack.c.b16 %v1125, %v1123
  %v1782 = vpack.c.b16 %v1126, %v1124
  %v1783 = vpack.c.b16 %v1129, %v1127
  %v1784 = vpack.c.b16 %v1130, %v1128
  %v1785 = vpack.c.b16 %v1133, %v1131
  %v1786 = vpack.c.b16 %v1134, %v1132
  %v1787 = vpack.c.b16 %v1137, %v1135
  %v1788 = vpack.c.b16 %v1138, %v1136
  %v1789 = vpack.c.b16 %v1141, %v1139
  %v1790 = vpack.c.b16 %v1142, %v1140
  %v1791 = vpack.c.b16 %v1145, %v1143
  %v1792 = vpack.c.b16 %v1146, %v1144
  %v1793 = vpack.c.b16 %v1149, %v1147
  %v1794 = vpack.c.b16 %v1150, %v1148
  %v1795 = vpack.c.b16 %v1153, %v1151
  %v1796 = vpack.c.b16 %v1154, %v1152
  %v1797 = vpack.c.b16 %v1157, %v1155
  %v1798 = vpack.c.b16 %v1158, %v1156
  %v1799 = vpack.c.b16 %v1161, %v1159
  %v1800 = vpack.c.b16 %v1162, %v1160
  %v1801 = vpack.c.b16 %v1165, %v1163
  %v1802 = vpack.c.b16 %v1166, %v1164
  %v1803 = vpack.c.b16 %v1169, %v1167
  %v1804 = vpack.c.b16 %v1170, %v1168
  %v1805 = vpack.c.b16 %v1173, %v1171
  %v1806 = vpack.c.b16 %v1174, %v1172
  %v1807 = vpack.c.b16 %v1177, %v1175
  %v1808 = vpack.c.b16 %v1178, %v1176
  %v1809 = vpack.c.b16 %v1181, %v1179
  %v1810 = vpack.c.b16 %v1182, %v1180
  %v1811 = vpack.c.b16 %v1185, %v1183
  %v1812 = vpack.c.b16 %v1186, %v1184
  %v1813 = vpack.c.b16 %v1189, %v1187
  %v1814 = vpack.c.b16 %v1190, %v1188
  %v1815 = vpack.c.b16 %v1193, %v1191
  %v1816 = vpack.c.b16 %v1194, %v1192
  %v1817 = vpack.c.b16 %v1197, %v1195
  %v1818 = vpack.c.b16 %v1198, %v1196
  %v1819 = vpack.c.b16 %v1201, %v1199
  %v1820 = vpack.c.b16 %v1202, %v1200
  %v1821 = vpack.c.b16 %v1205, %v1203
  %v1822 = vpack.c.b16 %v1206, %v1204
  %v1823 = vpack.c.b16 %v1209, %v1207
  %v1824 = vpack.c.b16 %v1210, %v1208
  %v1825 = vpack.c.b16 %v1213, %v1211
  %v1826 = vpack.c.b16 %v1214, %v1212
  %v1827 = vpack.c.b16 %v1217, %v1215
  %v1828 = vpack.c.b16 %v1218, %v1216
  %v1829 = vpack.c.b16 %v1221, %v1219
  %v1830 = vpack.c.b16 %v1222, %v1220
  %v1831 = vpack.c.b16 %v1225, %v1223
  %v1832 = vpack.c.b16 %v1226, %v1224
  %v1833 = vpack.c.b16 %v1229, %v1227
  %v1834 = vpack.c.b16 %v1230, %v1228
  %v1835 = vpack.c.b16 %v1233, %v1231
  %v1836 = vpack.c.b16 %v1234, %v1232
  %v1837 = vpack.c.b16 %v1237, %v1235
  %v1838 = vpack.c.b16 %v1238, %v1236
  %v1839 = vpack.c.b16 %v1241, %v1239
  %v1840 = vpack.c.b16 %v1242, %v1240
  %v1841 = vpack.c.b16 %v1245, %v1243
  %v1842 = vpack.c.b16 %v1246, %v1244
  %v1843 = vpack.c.b16 %v1249, %v1247
  %v1844 = vpack.c.b16 %v1250, %v1248
  %v1845 = vpack.c.b16 %v1253, %v1251
  %v1846 = vpack.c.b16 %v1254, %v1252
  %v1847 = vpack.c.b16 %v1257, %v1255
  %v1848 = vpack.c.b16 %v1258, %v1256
  %v1849 = vpack.c.b16 %v1261, %v1259
  %v1850 = vpack.c.b16 %v1262, %v1260
  %v1851 = vpack.c.b16 %v1265, %v1263
  %v1852 = vpack.c.b16 %v1266, %v1264
  %v1853 = vpack.c.b16 %v1269, %v1267
  %v1854 = vpack.c.b16 %v1270, %v1268
  %v1855 = vpack.c.b16 %v1273, %v1271
  %v1856 = vpack.c.b16 %v1274, %v1272
  %v1857 = vpack.c.b16 %v1277, %v1275
  %v1858 = vpack.c.b16 %v1278, %v1276
  %v1859 = vpack.c.b16 %v1281, %v1279
  %v1860 = vpack.c.b16 %v1282, %v1280
  %v1861 = vpack.c.b16 %v1285, %v1283
  %v1862 = vpack.c.b16 %v1286, %v1284
  %v1863 = vpack.c.b16 %v1289, %v1287
  %v1864 = vpack.c.b16 %v1290, %v1288
  %v1865 = vpack.c.b16 %v1293, %v1291
  %v1866 = vpack.c.b16 %v1294, %v1292
  %v1867 = vpack.c.b16 %v1297, %v1295
  %v1868 = vpack.c.b16 %v1298, %v1296
  %v1869 = vpack.c.b16 %v1301, %v1299
  %v1870 = vpack.c.b16 %v1302, %v1300
  %v1871 = vpack.c.b16 %v1305, %v1303
  %v1872 = vpack.c.b16 %v1306, %v1304
  %v1873 = vpack.c.b16 %v1309, %v1307
  %v1874 = vpack.c.b16 %v1310, %v1308
  %v1875 = vpack.c.b16 %v1313, %v1311
  %v1876 = vpack.c.b16 %v1314, %v1312
  %v1877 = vpack.c.b16 %v1317, %v1315
  %v1878 = vpack.c.b16 %v1318, %v1316
  %v1879 = vpack.c.b16 %v1321, %v1319
  %v1880 = vpack.c.b16 %v1322, %v1320
  %v1881 = vpack.c.b16 %v1325, %v1323
  %v1882 = vpack.c.b16 %v1326, %v1324
  %v1883 = vpack.c.b16 %v1329, %v1327
  %v1884 = vpack.c.b16 %v1330, %v1328
  %v1885 = vpack.c.b16 %v1333, %v1331
  %v1886 = vpack.c.b16 %v1334, %v1332
  %v1887 = vpack.c.b16 %v1337, %v1335
  %v1888 = vpack.c.b16 %v1338, %v1336
  %v1889 = vpack.c.b16 %v1341, %v1339
  %v1890 = vpack.c.b16 %v1342, %v1340
  %v1891 = vpack.c.b16 %v1345, %v1343
  %v1892 = vpack.c.b16 %v1346, %v1344
  %v1893 = vpack.c.b16 %v1349, %v1347
  %v1894 = vpack.c.b16 %v1350, %v1348
  %v1895 = vpack.c.b16 %v1353, %v1351
  %v1896 = vpack.c.b16 %v1354, %v1352
  %v1897 = vpack.c.b16 %v1357, %v1355
  %v1898 = vpack.c.b16 %v1358, %v1356
  %v1899 = vpack.c.b16 %v1361, %v1359
  %v1900 = vpack.c.b16 %v1362, %v1360
  %v1901 = vpack.c.b16 %v1365, %v1363
  %v1902 = vpack.c.b16 %v1366, %v1364
  %v1903 = vpack.c.b16 %v1369, %v1367
  %v1904 = vpack.c.b16 %v1370, %v1368
  %v1905 = vpack.c.b16 %v1373, %v1371
  %v1906 = vpack.c.b16 %v1374, %v1372
  %v1907 = vpack.c.b16 %v1377, %v1375
  %v1908 = vpack.c.b16 %v1378, %v1376
  %v1909 = vpack.c.b16 %v1381, %v1379
  %v1910 = vpack.c.b16 %v1382, %v1380
  %v1911 = vpack.c.b16 %v1385, %v1383
  %v1912 = vpack.c.b16 %v1386, %v1384
  %v1913 = vpack.c.b16 %v1389, %v1387
  %v1914 = vpack.c.b16 %v1390, %v1388
  %v1915 = vpack.c.b16 %v1393, %v1391
  %v1916 = vpack.c.b16 %v1394, %v1392
  %v1917 = vpack.c.b16 %v1397, %v1395
  %v1918 = vpack.c.b16 %v1398, %v1396
  %v1919 = vpack.c.b16 %v1401, %v1399
  %v1920 = vpack.c.b16 %v1402, %v1400
  %v1921 = vpack.c.b16 %v1405, %v1403
  %v1922 = vpack.c.b16 %v1406, %v1404
  %v1923 = vpack.c.b16 %v1409, %v1407
  %v1924 = vpack.c.b16 %v1410, %v1408
  %v1925 = vpack.c.b16 %v1413, %v1411
  %v1926 = vpack.c.b16 %v1414, %v1412
  %v1927 = vpack.c.b16 %v1417, %v1415
  %v1928 = vpack.c.b16 %v1418, %v1416
  %v1929 = vpack.c.b16 %v1421, %v1419
  %v1930 = vpack.c.b16 %v1422, %v1420
  %v1931 = vpack.c.b16 %v1425, %v1423
  %v1932 = vpack.c.b16 %v1426, %v1424
  %v1933 = vpack.c.b16 %v1429, %v1427
  %v1934 = vpack.c.b16 %v1430, %v1428
  %v1935 = vpack.c.b16 %v1433, %v1431
  %v1936 = vpack.c.b16 %v1434, %v1432
  %v1937 = vpack.c.b16 %v1437, %v1435
  %v1938 = vpack.c.b16 %v1438, %v1436
  %v1939 = vpack.c.b16 %v1441, %v1439
  %v1940 = vpack.c.b16 %v1442, %v1440
  %v1941 = vpack.c.b16 %v1445, %v1443
  %v1942 = vpack.c.b16 %v1446, %v1444
  %v1943 = vpack.c.b16 %v1449, %v1447
  %v1944 = vpack.c.b16 %v1450, %v1448
  %v1945 = vpack.c.b16 %v1453, %v1451
  %v1946 = vpack.c.b16 %v1454, %v1452
  %v1947 = vpack.c.b16 %v1457, %v1455
  %v1948 = vpack.c.b16 %v1458, %v1456
  %v1949 = vpack.c.b16 %v1461, %v1459
  %v1950 = vpack.c.b16 %v1462, %v1460
  %v1951 = vpack.c.b16 %v1465, %v1463
  %v1952 = vpack.c.b16 %v1466, %v1464
  %v1953 = vpack.c.b16 %v1469, %v1467
  %v1954 = vpack.c.b16 %v1470, %v1468
  %v1955 = vpack.c.b16 %v1473, %v1471
  %v1956 = vpack.c.b16 %v1474, %v1472
  %v1957 = vpack.c.b16 %v1477, %v1475
  %v1958 = vpack.c.b16 %v1478, %v1476
  %v1959 = vpack.c.b16 %v1481, %v1479
  %v1960 = vpack.c.b16 %v1482, %v1480
  %v1961 = vpack.c.b16 %v1485, %v1483
  %v1962 = vpack.c.b16 %v1486, %v1484
  %v1963 = vpack.c.b16 %v1489, %v1487
  %v1964 = vpack.c.b16 %v1490, %v1488
  %v1965 = vpack.c.b16 %v1493, %v1491
  %v1966 = vpack.c.b16 %v1494, %v1492
  %v1967 = vpack.c.b16 %v1497, %v1495
  %v1968 = vpack.c.b16 %v1498, %v1496
  %v1969 = vpack.c.b16 %v1501, %v1499
  %v1970 = vpack.c.b16 %v1502, %v1500
  %v1971 = vpack.c.b16 %v1505, %v1503
  %v1972 = vpack.c.b16 %v1506, %v1504
  %v1973 = vpack.c.b16 %v1509, %v1507
  %v1974 = vpack.c.b16 %v1510, %v1508
  %v1975 = vpack.c.b16 %v1513, %v1511
  %v1976 = vpack.c.b16 %v1514, %v1512
  %v1977 = vpack.c.b16 %v1517, %v1515
  %v1978 = vpack.c.b16 %v1518, %v1516
  %v1979 = vpack.c.b16 %v1521, %v1519
  %v1980 = vpack.c.b16 %v1522, %v1520
  %v1981 = vpack.c.b16 %v1525, %v1523
  %v1982 = vpack.c.b16 %v1526, %v1524
  %v1983 = vpack.c.b16 %v1529, %v1527
  %v1984 = vpack.c.b16 %v1530, %v1528
  %v1985 = vpack.c.b16 %v1533, %v1531
  %v1986 = vpack.c.b16 %v1534, %v1532
  %v1987 = vpack.c.b16 %v1537, %v1535
  %v1988 = vpack.c.b16 %v1538, %v1536
  %v1989 = vpack.c.b16 %v1541, %v1539
  %v1990 = vpack.c.b16 %v1542, %v1540
  %v1991 = vpack.c.b16 %v1545, %v1543
  %v1992 = vpack.c.b16 %v1546, %v1544
  %v1993 = vpack.c.b16 %v1549, %v1547
  %v1994 = vpack.c.b16 %v1550, %v1548
  %v1995 = vpack.c.b16 %v1553, %v1551
  %v1996 = vpack.c.b16 %v1554, %v1552
  %v1997 = vpack.c.b16 %v1557, %v1555
  %v1998 = vpack.c.b16 %v1558, %v1556
  %v1999 = vpack.c.b16 %v1561, %v1559
  %v2000 = vpack.c.b16 %v1562, %v1560
  %v2001 = vpack.c.b16 %v1565, %v1563
  %v2002 = vpack.c.b16 %v1566, %v1564
  %v2003 = vpack.c.b16 %v1569, %v1567
  %v2004 = vpack.c.b16 %v1570, %v1568
  %v2005 = vpack.c.b16 %v1573, %v1571
  %v2006 = vpack.c.b16 %v1574, %v1572
  %v2007 = vpack.c.b16 %v1577, %v1575
  %v2008 = vpack.c.b16 %v1578, %v1576
  %v2009 = vpack.c.b16 %v1581, %v1579
  %v2010 = vpack.c.b16 %v1582, %v1580
  %v2011 = vpack.c.b16 %v1585, %v1583
  %v2012 = vpack.c.b16 %v1586, %v1584
  %v2013 = vpack.c.b16 %v1589, %v1587
  %v2014 = vpack.c.b16 %v1590, %v1588
  %v2015 = vpack.c.b16 %v1593, %v1591
  %v2016 = vpack.c.b16 %v1594, %v1592
  %v2017 = vpack.c.b16 %v1597, %v1595
  %v2018 = vpack.c.b16 %v1598, %v1596
  %v2019 = vpack.c.b16 %v1601, %v1599
  %v2020 = vpack.c.b16 %v1602, %v1600
  %v2021 = vpack.c.b16 %v1605, %v1603
  %v2022 = vpack.c.b16 %v1606, %v1604
  %v2023 = vpack.c.b16 %v1609, %v1607
  %v2024 = vpack.c.b16 %v1610, %v1608
  %v2025 = vpack.c.b16 %v1613, %v1611
  %v2026 = vpack.c.b16 %v1614, %v1612
  %v2027 = vpack.c.b16 %v1617, %v1615
  %v2028 = vpack.c.b16 %v1618, %v1616
  %v2029 = vpack.c.b16 %v1621, %v1619
  %v2030 = vpack.c.b16 %v1622, %v1620
  %v2031 = vpack.c.b16 %v1625, %v1623
  %v2032 = vpack.c.b16 %v1626, %v1624
  %v2033 = vpack.c.b16 %v1629, %v1627
  %v2034 = vpack.c.b16 %v1630, %v1628
  %v2035 = vpack.c.b16 %v1633, %v1631
  %v2036 = vpack.c.b16 %v1634, %v1632
  %v2037 = vpack.c.b16 %v1637, %v1635
  %v2038 = vpack.c.b16 %v1638, %v1636
  %v2039 = vpack.c.b16 %v1641, %v1639
  %v2040 = vpack.c.b16 %v1642, %v1640
  %v2041 = vpack.c.b16 %v1645, %v1643
  %v2042 = vpack.c.b16 %v1646, %v1644
  %v2043 = vpack.c.b16 %v1649, %v1647
  %v2044 = vpack.c.b16 %v1650, %v1648
  %v2045 = vpack.c.b16 %v1653, %v1651
  %v2046 = vpack.c.b16 %v1654, %v1652
  %v2047 = vpack.c.b16 %v1657, %v1655
  %v2048 = vpack.c.b16 %v1658, %v1656
  %v2049 = vpack.c.b16 %v1661, %v1659
  %v2050 = vpack.c.b16 %v1662, %v1660
  %v2051 = vpack.c.b16 %v1665, %v1663
  %v2052 = vpack.c.b16 %v1666, %v1664
  %v2053 = vpack.c.b16 %v1669, %v1667
  %v2054 = vpack.c.b16 %v1670, %v1668
  %2439 = vmatpush.bf16.msra.mxu0 %v1685
  %2440 = vmatpush.bf16.msra.mxu0 %v1683
  %2441 = vmatpush.bf16.msra.mxu0 %v1681
  %2442 = vmatpush.bf16.msra.mxu0 %v1679
  %2443 = vmatpush.bf16.msra.mxu0 %v1677
  %2444 = vmatpush.bf16.msra.mxu0 %v1675
  %2445 = vmatpush.bf16.msra.mxu0 %v1673
  %2446 = vmatpush.bf16.msra.mxu0 %v1671
  %2447 = vmatmul.bf16.gmra.mxu0 %v471
  %v2448 = vpop.f32.mrf.mxu0
  %v2449 = vadd.f32 %v431, %v2448
  %v2450 = vpop.f32.mrf.mxu0
  %2451 = vdwg.mxu0
  %2452 = vmatpush.bf16.msra.mxu0 %v1701
  %2453 = vmatpush.bf16.msra.mxu0 %v1699
  %2454 = vmatpush.bf16.msra.mxu0 %v1697
  %2455 = vmatpush.bf16.msra.mxu0 %v1695
  %2456 = vmatpush.bf16.msra.mxu0 %v1693
  %2457 = vmatpush.bf16.msra.mxu0 %v1691
  %2458 = vmatpush.bf16.msra.mxu0 %v1689
  %2459 = vmatpush.bf16.msra.mxu0 %v1687
  %2460 = vmatmul.bf16.gmra.mxu0 %v472
  %v2461 = vpop.f32.mrf.mxu0
  %v2462 = vadd.f32 %v2449, %v2461
  %v2463 = vpop.f32.mrf.mxu0
  %2464 = vdwg.mxu0
  %2465 = vmatpush.bf16.msra.mxu0 %v1717
  %2466 = vmatpush.bf16.msra.mxu0 %v1715
  %2467 = vmatpush.bf16.msra.mxu0 %v1713
  %2468 = vmatpush.bf16.msra.mxu0 %v1711
  %2469 = vmatpush.bf16.msra.mxu0 %v1709
  %2470 = vmatpush.bf16.msra.mxu0 %v1707
  %2471 = vmatpush.bf16.msra.mxu0 %v1705
  %2472 = vmatpush.bf16.msra.mxu0 %v1703
  %2473 = vmatmul.bf16.gmra.mxu0 %v473
  %v2474 = vpop.f32.mrf.mxu0
  %v2475 = vadd.f32 %v2462, %v2474
  %v2476 = vpop.f32.mrf.mxu0
  %2477 = vdwg.mxu0
  %2478 = vmatpush.bf16.msra.mxu0 %v1733
  %2479 = vmatpush.bf16.msra.mxu0 %v1731
  %2480 = vmatpush.bf16.msra.mxu0 %v1729
  %2481 = vmatpush.bf16.msra.mxu0 %v1727
  %2482 = vmatpush.bf16.msra.mxu0 %v1725
  %2483 = vmatpush.bf16.msra.mxu0 %v1723
  %2484 = vmatpush.bf16.msra.mxu0 %v1721
  %2485 = vmatpush.bf16.msra.mxu0 %v1719
  %2486 = vmatmul.bf16.gmra.mxu0 %v474
  %v2487 = vpop.f32.mrf.mxu0
  %v2488 = vadd.f32 %v2475, %v2487
  %v2489 = vpop.f32.mrf.mxu0
  %2490 = vdwg.mxu0
  %2491 = vmatpush.bf16.msra.mxu0 %v1749
  %2492 = vmatpush.bf16.msra.mxu0 %v1747
  %2493 = vmatpush.bf16.msra.mxu0 %v1745
  %2494 = vmatpush.bf16.msra.mxu0 %v1743
  %2495 = vmatpush.bf16.msra.mxu0 %v1741
  %2496 = vmatpush.bf16.msra.mxu0 %v1739
  %2497 = vmatpush.bf16.msra.mxu0 %v1737
  %2498 = vmatpush.bf16.msra.mxu0 %v1735
  %2499 = vmatmul.bf16.gmra.mxu0 %v475
  %v2500 = vpop.f32.mrf.mxu0
  %v2501 = vadd.f32 %v2488, %v2500
  %v2502 = vpop.f32.mrf.mxu0
  %2503 = vdwg.mxu0
  %2504 = vmatpush.bf16.msra.mxu0 %v1765
  %2505 = vmatpush.bf16.msra.mxu0 %v1763
  %2506 = vmatpush.bf16.msra.mxu0 %v1761
  %2507 = vmatpush.bf16.msra.mxu0 %v1759
  %2508 = vmatpush.bf16.msra.mxu0 %v1757
  %2509 = vmatpush.bf16.msra.mxu0 %v1755
  %2510 = vmatpush.bf16.msra.mxu0 %v1753
  %2511 = vmatpush.bf16.msra.mxu0 %v1751
  %2512 = vmatmul.bf16.gmra.mxu0 %v476
  %v2513 = vpop.f32.mrf.mxu0
  %v2514 = vadd.f32 %v2501, %v2513
  %v2515 = vpop.f32.mrf.mxu0
  %2516 = vdwg.mxu0
  %2517 = vmatpush.bf16.msra.mxu0 %v1781
  %2518 = vmatpush.bf16.msra.mxu0 %v1779
  %2519 = vmatpush.bf16.msra.mxu0 %v1777
  %2520 = vmatpush.bf16.msra.mxu0 %v1775
  %2521 = vmatpush.bf16.msra.mxu0 %v1773
  %2522 = vmatpush.bf16.msra.mxu0 %v1771
  %2523 = vmatpush.bf16.msra.mxu0 %v1769
  %2524 = vmatpush.bf16.msra.mxu0 %v1767
  %2525 = vmatmul.bf16.gmra.mxu0 %v477
  %v2526 = vpop.f32.mrf.mxu0
  %v2527 = vadd.f32 %v2514, %v2526
  %v2528 = vpop.f32.mrf.mxu0
  %2529 = vdwg.mxu0
  %2530 = vmatpush.bf16.msra.mxu0 %v1797
  %2531 = vmatpush.bf16.msra.mxu0 %v1795
  %2532 = vmatpush.bf16.msra.mxu0 %v1793
  %2533 = vmatpush.bf16.msra.mxu0 %v1791
  %2534 = vmatpush.bf16.msra.mxu0 %v1789
  %2535 = vmatpush.bf16.msra.mxu0 %v1787
  %2536 = vmatpush.bf16.msra.mxu0 %v1785
  %2537 = vmatpush.bf16.msra.mxu0 %v1783
  %2538 = vmatmul.bf16.gmra.mxu0 %v478
  %v2539 = vpop.f32.mrf.mxu0
  %v2540 = vadd.f32 %v2527, %v2539
  %v2541 = vpop.f32.mrf.mxu0
  %2542 = vdwg.mxu0
  %2543 = vmatpush.bf16.msra.mxu0 %v1813
  %2544 = vmatpush.bf16.msra.mxu0 %v1811
  %2545 = vmatpush.bf16.msra.mxu0 %v1809
  %2546 = vmatpush.bf16.msra.mxu0 %v1807
  %2547 = vmatpush.bf16.msra.mxu0 %v1805
  %2548 = vmatpush.bf16.msra.mxu0 %v1803
  %2549 = vmatpush.bf16.msra.mxu0 %v1801
  %2550 = vmatpush.bf16.msra.mxu0 %v1799
  %2551 = vmatmul.bf16.gmra.mxu0 %v479
  %v2552 = vpop.f32.mrf.mxu0
  %v2553 = vadd.f32 %v2540, %v2552
  %v2554 = vpop.f32.mrf.mxu0
  %2555 = vdwg.mxu0
  %2556 = vmatpush.bf16.msra.mxu0 %v1829
  %2557 = vmatpush.bf16.msra.mxu0 %v1827
  %2558 = vmatpush.bf16.msra.mxu0 %v1825
  %2559 = vmatpush.bf16.msra.mxu0 %v1823
  %2560 = vmatpush.bf16.msra.mxu0 %v1821
  %2561 = vmatpush.bf16.msra.mxu0 %v1819
  %2562 = vmatpush.bf16.msra.mxu0 %v1817
  %2563 = vmatpush.bf16.msra.mxu0 %v1815
  %2564 = vmatmul.bf16.gmra.mxu0 %v480
  %v2565 = vpop.f32.mrf.mxu0
  %v2566 = vadd.f32 %v2553, %v2565
  %v2567 = vpop.f32.mrf.mxu0
  %2568 = vdwg.mxu0
  %2569 = vmatpush.bf16.msra.mxu0 %v1845
  %2570 = vmatpush.bf16.msra.mxu0 %v1843
  %2571 = vmatpush.bf16.msra.mxu0 %v1841
  %2572 = vmatpush.bf16.msra.mxu0 %v1839
  %2573 = vmatpush.bf16.msra.mxu0 %v1837
  %2574 = vmatpush.bf16.msra.mxu0 %v1835
  %2575 = vmatpush.bf16.msra.mxu0 %v1833
  %2576 = vmatpush.bf16.msra.mxu0 %v1831
  %2577 = vmatmul.bf16.gmra.mxu0 %v481
  %v2578 = vpop.f32.mrf.mxu0
  %v2579 = vadd.f32 %v2566, %v2578
  %v2580 = vpop.f32.mrf.mxu0
  %2581 = vdwg.mxu0
  %2582 = vmatpush.bf16.msra.mxu0 %v1861
  %2583 = vmatpush.bf16.msra.mxu0 %v1859
  %2584 = vmatpush.bf16.msra.mxu0 %v1857
  %2585 = vmatpush.bf16.msra.mxu0 %v1855
  %2586 = vmatpush.bf16.msra.mxu0 %v1853
  %2587 = vmatpush.bf16.msra.mxu0 %v1851
  %2588 = vmatpush.bf16.msra.mxu0 %v1849
  %2589 = vmatpush.bf16.msra.mxu0 %v1847
  %2590 = vmatmul.bf16.gmra.mxu0 %v482
  %v2591 = vpop.f32.mrf.mxu0
  %v2592 = vadd.f32 %v2579, %v2591
  %v2593 = vpop.f32.mrf.mxu0
  %2594 = vdwg.mxu0
  %2595 = vmatpush.bf16.msra.mxu0 %v1877
  %2596 = vmatpush.bf16.msra.mxu0 %v1875
  %2597 = vmatpush.bf16.msra.mxu0 %v1873
  %2598 = vmatpush.bf16.msra.mxu0 %v1871
  %2599 = vmatpush.bf16.msra.mxu0 %v1869
  %2600 = vmatpush.bf16.msra.mxu0 %v1867
  %2601 = vmatpush.bf16.msra.mxu0 %v1865
  %2602 = vmatpush.bf16.msra.mxu0 %v1863
  %2603 = vmatmul.bf16.gmra.mxu0 %v483
  %v2604 = vpop.f32.mrf.mxu0
  %v2605 = vadd.f32 %v2592, %v2604
  %v2606 = vpop.f32.mrf.mxu0
  %2607 = vdwg.mxu0
  %2608 = vmatpush.bf16.msra.mxu0 %v1893
  %2609 = vmatpush.bf16.msra.mxu0 %v1891
  %2610 = vmatpush.bf16.msra.mxu0 %v1889
  %2611 = vmatpush.bf16.msra.mxu0 %v1887
  %2612 = vmatpush.bf16.msra.mxu0 %v1885
  %2613 = vmatpush.bf16.msra.mxu0 %v1883
  %2614 = vmatpush.bf16.msra.mxu0 %v1881
  %2615 = vmatpush.bf16.msra.mxu0 %v1879
  %2616 = vmatmul.bf16.gmra.mxu0 %v484
  %v2617 = vpop.f32.mrf.mxu0
  %v2618 = vadd.f32 %v2605, %v2617
  %v2619 = vpop.f32.mrf.mxu0
  %2620 = vdwg.mxu0
  %2621 = vmatpush.bf16.msra.mxu0 %v1909
  %2622 = vmatpush.bf16.msra.mxu0 %v1907
  %2623 = vmatpush.bf16.msra.mxu0 %v1905
  %2624 = vmatpush.bf16.msra.mxu0 %v1903
  %2625 = vmatpush.bf16.msra.mxu0 %v1901
  %2626 = vmatpush.bf16.msra.mxu0 %v1899
  %2627 = vmatpush.bf16.msra.mxu0 %v1897
  %2628 = vmatpush.bf16.msra.mxu0 %v1895
  %2629 = vmatmul.bf16.gmra.mxu0 %v485
  %v2630 = vpop.f32.mrf.mxu0
  %v2631 = vadd.f32 %v2618, %v2630
  %v2632 = vpop.f32.mrf.mxu0
  %2633 = vdwg.mxu0
  %2634 = vmatpush.bf16.msra.mxu0 %v1925
  %2635 = vmatpush.bf16.msra.mxu0 %v1923
  %2636 = vmatpush.bf16.msra.mxu0 %v1921
  %2637 = vmatpush.bf16.msra.mxu0 %v1919
  %2638 = vmatpush.bf16.msra.mxu0 %v1917
  %2639 = vmatpush.bf16.msra.mxu0 %v1915
  %2640 = vmatpush.bf16.msra.mxu0 %v1913
  %2641 = vmatpush.bf16.msra.mxu0 %v1911
  %2642 = vmatmul.bf16.gmra.mxu0 %v486
  %v2643 = vpop.f32.mrf.mxu0
  %v2644 = vadd.f32 %v2631, %v2643
  %v2645 = vpop.f32.mrf.mxu0
  %2646 = vdwg.mxu0
  %2647 = vmatpush.bf16.msra.mxu0 %v1941
  %2648 = vmatpush.bf16.msra.mxu0 %v1939
  %2649 = vmatpush.bf16.msra.mxu0 %v1937
  %2650 = vmatpush.bf16.msra.mxu0 %v1935
  %2651 = vmatpush.bf16.msra.mxu0 %v1933
  %2652 = vmatpush.bf16.msra.mxu0 %v1931
  %2653 = vmatpush.bf16.msra.mxu0 %v1929
  %2654 = vmatpush.bf16.msra.mxu0 %v1927
  %2655 = vmatmul.bf16.gmra.mxu0 %v487
  %v2656 = vpop.f32.mrf.mxu0
  %v2657 = vadd.f32 %v2644, %v2656
  %v2658 = vpop.f32.mrf.mxu0
  %2659 = vdwg.mxu0
  %2660 = vmatpush.bf16.msra.mxu0 %v1957
  %2661 = vmatpush.bf16.msra.mxu0 %v1955
  %2662 = vmatpush.bf16.msra.mxu0 %v1953
  %2663 = vmatpush.bf16.msra.mxu0 %v1951
  %2664 = vmatpush.bf16.msra.mxu0 %v1949
  %2665 = vmatpush.bf16.msra.mxu0 %v1947
  %2666 = vmatpush.bf16.msra.mxu0 %v1945
  %2667 = vmatpush.bf16.msra.mxu0 %v1943
  %2668 = vmatmul.bf16.gmra.mxu0 %v488
  %v2669 = vpop.f32.mrf.mxu0
  %v2670 = vadd.f32 %v2657, %v2669
  %v2671 = vpop.f32.mrf.mxu0
  %2672 = vdwg.mxu0
  %2673 = vmatpush.bf16.msra.mxu0 %v1973
  %2674 = vmatpush.bf16.msra.mxu0 %v1971
  %2675 = vmatpush.bf16.msra.mxu0 %v1969
  %2676 = vmatpush.bf16.msra.mxu0 %v1967
  %2677 = vmatpush.bf16.msra.mxu0 %v1965
  %2678 = vmatpush.bf16.msra.mxu0 %v1963
  %2679 = vmatpush.bf16.msra.mxu0 %v1961
  %2680 = vmatpush.bf16.msra.mxu0 %v1959
  %2681 = vmatmul.bf16.gmra.mxu0 %v489
  %v2682 = vpop.f32.mrf.mxu0
  %v2683 = vadd.f32 %v2670, %v2682
  %v2684 = vpop.f32.mrf.mxu0
  %2685 = vdwg.mxu0
  %2686 = vmatpush.bf16.msra.mxu0 %v1989
  %2687 = vmatpush.bf16.msra.mxu0 %v1987
  %2688 = vmatpush.bf16.msra.mxu0 %v1985
  %2689 = vmatpush.bf16.msra.mxu0 %v1983
  %2690 = vmatpush.bf16.msra.mxu0 %v1981
  %2691 = vmatpush.bf16.msra.mxu0 %v1979
  %2692 = vmatpush.bf16.msra.mxu0 %v1977
  %2693 = vmatpush.bf16.msra.mxu0 %v1975
  %2694 = vmatmul.bf16.gmra.mxu0 %v490
  %v2695 = vpop.f32.mrf.mxu0
  %v2696 = vadd.f32 %v2683, %v2695
  %v2697 = vpop.f32.mrf.mxu0
  %2698 = vdwg.mxu0
  %2699 = vmatpush.bf16.msra.mxu0 %v2005
  %2700 = vmatpush.bf16.msra.mxu0 %v2003
  %2701 = vmatpush.bf16.msra.mxu0 %v2001
  %2702 = vmatpush.bf16.msra.mxu0 %v1999
  %2703 = vmatpush.bf16.msra.mxu0 %v1997
  %2704 = vmatpush.bf16.msra.mxu0 %v1995
  %2705 = vmatpush.bf16.msra.mxu0 %v1993
  %2706 = vmatpush.bf16.msra.mxu0 %v1991
  %2707 = vmatmul.bf16.gmra.mxu0 %v491
  %v2708 = vpop.f32.mrf.mxu0
  %v2709 = vadd.f32 %v2696, %v2708
  %v2710 = vpop.f32.mrf.mxu0
  %2711 = vdwg.mxu0
  %2712 = vmatpush.bf16.msra.mxu0 %v2021
  %2713 = vmatpush.bf16.msra.mxu0 %v2019
  %2714 = vmatpush.bf16.msra.mxu0 %v2017
  %2715 = vmatpush.bf16.msra.mxu0 %v2015
  %2716 = vmatpush.bf16.msra.mxu0 %v2013
  %2717 = vmatpush.bf16.msra.mxu0 %v2011
  %2718 = vmatpush.bf16.msra.mxu0 %v2009
  %2719 = vmatpush.bf16.msra.mxu0 %v2007
  %2720 = vmatmul.bf16.gmra.mxu0 %v492
  %v2721 = vpop.f32.mrf.mxu0
  %v2722 = vadd.f32 %v2709, %v2721
  %v2723 = vpop.f32.mrf.mxu0
  %2724 = vdwg.mxu0
  %2725 = vmatpush.bf16.msra.mxu0 %v2037
  %2726 = vmatpush.bf16.msra.mxu0 %v2035
  %2727 = vmatpush.bf16.msra.mxu0 %v2033
  %2728 = vmatpush.bf16.msra.mxu0 %v2031
  %2729 = vmatpush.bf16.msra.mxu0 %v2029
  %2730 = vmatpush.bf16.msra.mxu0 %v2027
  %2731 = vmatpush.bf16.msra.mxu0 %v2025
  %2732 = vmatpush.bf16.msra.mxu0 %v2023
  %2733 = vmatmul.bf16.gmra.mxu0 %v493
  %v2734 = vpop.f32.mrf.mxu0
  %v2735 = vadd.f32 %v2722, %v2734
  %v2736 = vpop.f32.mrf.mxu0
  %2737 = vdwg.mxu0
  %2738 = vmatpush.bf16.msra.mxu0 %v2053
  %2739 = vmatpush.bf16.msra.mxu0 %v2051
  %2740 = vmatpush.bf16.msra.mxu0 %v2049
  %2741 = vmatpush.bf16.msra.mxu0 %v2047
  %2742 = vmatpush.bf16.msra.mxu0 %v2045
  %2743 = vmatpush.bf16.msra.mxu0 %v2043
  %2744 = vmatpush.bf16.msra.mxu0 %v2041
  %2745 = vmatpush.bf16.msra.mxu0 %v2039
  %2746 = vmatmul.bf16.gmra.mxu0 %v494
  %v2747 = vpop.f32.mrf.mxu0
  %v2748 = vadd.f32 %v2735, %v2747
  %v2749 = vpop.f32.mrf.mxu0
  %2750 = vdwg.mxu0
  %2751 = vmatpush.bf16.msra.mxu0 %v1686
  %2752 = vmatpush.bf16.msra.mxu0 %v1684
  %2753 = vmatpush.bf16.msra.mxu0 %v1682
  %2754 = vmatpush.bf16.msra.mxu0 %v1680
  %2755 = vmatpush.bf16.msra.mxu0 %v1678
  %2756 = vmatpush.bf16.msra.mxu0 %v1676
  %2757 = vmatpush.bf16.msra.mxu0 %v1674
  %2758 = vmatpush.bf16.msra.mxu0 %v1672
  %2759 = vmatmul.bf16.gmra.mxu0 %v471
  %v2760 = vpop.f32.mrf.mxu0
  %v2761 = vadd.f32 %v432, %v2760
  %v2762 = vpop.f32.mrf.mxu0
  %2763 = vdwg.mxu0
  %2764 = vmatpush.bf16.msra.mxu0 %v1702
  %2765 = vmatpush.bf16.msra.mxu0 %v1700
  %2766 = vmatpush.bf16.msra.mxu0 %v1698
  %2767 = vmatpush.bf16.msra.mxu0 %v1696
  %2768 = vmatpush.bf16.msra.mxu0 %v1694
  %2769 = vmatpush.bf16.msra.mxu0 %v1692
  %2770 = vmatpush.bf16.msra.mxu0 %v1690
  %2771 = vmatpush.bf16.msra.mxu0 %v1688
  %2772 = vmatmul.bf16.gmra.mxu0 %v472
  %v2773 = vpop.f32.mrf.mxu0
  %v2774 = vadd.f32 %v2761, %v2773
  %v2775 = vpop.f32.mrf.mxu0
  %2776 = vdwg.mxu0
  %2777 = vmatpush.bf16.msra.mxu0 %v1718
  %2778 = vmatpush.bf16.msra.mxu0 %v1716
  %2779 = vmatpush.bf16.msra.mxu0 %v1714
  %2780 = vmatpush.bf16.msra.mxu0 %v1712
  %2781 = vmatpush.bf16.msra.mxu0 %v1710
  %2782 = vmatpush.bf16.msra.mxu0 %v1708
  %2783 = vmatpush.bf16.msra.mxu0 %v1706
  %2784 = vmatpush.bf16.msra.mxu0 %v1704
  %2785 = vmatmul.bf16.gmra.mxu0 %v473
  %v2786 = vpop.f32.mrf.mxu0
  %v2787 = vadd.f32 %v2774, %v2786
  %v2788 = vpop.f32.mrf.mxu0
  %2789 = vdwg.mxu0
  %2790 = vmatpush.bf16.msra.mxu0 %v1734
  %2791 = vmatpush.bf16.msra.mxu0 %v1732
  %2792 = vmatpush.bf16.msra.mxu0 %v1730
  %2793 = vmatpush.bf16.msra.mxu0 %v1728
  %2794 = vmatpush.bf16.msra.mxu0 %v1726
  %2795 = vmatpush.bf16.msra.mxu0 %v1724
  %2796 = vmatpush.bf16.msra.mxu0 %v1722
  %2797 = vmatpush.bf16.msra.mxu0 %v1720
  %2798 = vmatmul.bf16.gmra.mxu0 %v474
  %v2799 = vpop.f32.mrf.mxu0
  %v2800 = vadd.f32 %v2787, %v2799
  %v2801 = vpop.f32.mrf.mxu0
  %2802 = vdwg.mxu0
  %2803 = vmatpush.bf16.msra.mxu0 %v1750
  %2804 = vmatpush.bf16.msra.mxu0 %v1748
  %2805 = vmatpush.bf16.msra.mxu0 %v1746
  %2806 = vmatpush.bf16.msra.mxu0 %v1744
  %2807 = vmatpush.bf16.msra.mxu0 %v1742
  %2808 = vmatpush.bf16.msra.mxu0 %v1740
  %2809 = vmatpush.bf16.msra.mxu0 %v1738
  %2810 = vmatpush.bf16.msra.mxu0 %v1736
  %2811 = vmatmul.bf16.gmra.mxu0 %v475
  %v2812 = vpop.f32.mrf.mxu0
  %v2813 = vadd.f32 %v2800, %v2812
  %v2814 = vpop.f32.mrf.mxu0
  %2815 = vdwg.mxu0
  %2816 = vmatpush.bf16.msra.mxu0 %v1766
  %2817 = vmatpush.bf16.msra.mxu0 %v1764
  %2818 = vmatpush.bf16.msra.mxu0 %v1762
  %2819 = vmatpush.bf16.msra.mxu0 %v1760
  %2820 = vmatpush.bf16.msra.mxu0 %v1758
  %2821 = vmatpush.bf16.msra.mxu0 %v1756
  %2822 = vmatpush.bf16.msra.mxu0 %v1754
  %2823 = vmatpush.bf16.msra.mxu0 %v1752
  %2824 = vmatmul.bf16.gmra.mxu0 %v476
  %v2825 = vpop.f32.mrf.mxu0
  %v2826 = vadd.f32 %v2813, %v2825
  %v2827 = vpop.f32.mrf.mxu0
  %2828 = vdwg.mxu0
  %2829 = vmatpush.bf16.msra.mxu0 %v1782
  %2830 = vmatpush.bf16.msra.mxu0 %v1780
  %2831 = vmatpush.bf16.msra.mxu0 %v1778
  %2832 = vmatpush.bf16.msra.mxu0 %v1776
  %2833 = vmatpush.bf16.msra.mxu0 %v1774
  %2834 = vmatpush.bf16.msra.mxu0 %v1772
  %2835 = vmatpush.bf16.msra.mxu0 %v1770
  %2836 = vmatpush.bf16.msra.mxu0 %v1768
  %2837 = vmatmul.bf16.gmra.mxu0 %v477
  %v2838 = vpop.f32.mrf.mxu0
  %v2839 = vadd.f32 %v2826, %v2838
  %v2840 = vpop.f32.mrf.mxu0
  %2841 = vdwg.mxu0
  %2842 = vmatpush.bf16.msra.mxu0 %v1798
  %2843 = vmatpush.bf16.msra.mxu0 %v1796
  %2844 = vmatpush.bf16.msra.mxu0 %v1794
  %2845 = vmatpush.bf16.msra.mxu0 %v1792
  %2846 = vmatpush.bf16.msra.mxu0 %v1790
  %2847 = vmatpush.bf16.msra.mxu0 %v1788
  %2848 = vmatpush.bf16.msra.mxu0 %v1786
  %2849 = vmatpush.bf16.msra.mxu0 %v1784
  %2850 = vmatmul.bf16.gmra.mxu0 %v478
  %v2851 = vpop.f32.mrf.mxu0
  %v2852 = vadd.f32 %v2839, %v2851
  %v2853 = vpop.f32.mrf.mxu0
  %2854 = vdwg.mxu0
  %2855 = vmatpush.bf16.msra.mxu0 %v1814
  %2856 = vmatpush.bf16.msra.mxu0 %v1812
  %2857 = vmatpush.bf16.msra.mxu0 %v1810
  %2858 = vmatpush.bf16.msra.mxu0 %v1808
  %2859 = vmatpush.bf16.msra.mxu0 %v1806
  %2860 = vmatpush.bf16.msra.mxu0 %v1804
  %2861 = vmatpush.bf16.msra.mxu0 %v1802
  %2862 = vmatpush.bf16.msra.mxu0 %v1800
  %2863 = vmatmul.bf16.gmra.mxu0 %v479
  %v2864 = vpop.f32.mrf.mxu0
  %v2865 = vadd.f32 %v2852, %v2864
  %v2866 = vpop.f32.mrf.mxu0
  %2867 = vdwg.mxu0
  %2868 = vmatpush.bf16.msra.mxu0 %v1830
  %2869 = vmatpush.bf16.msra.mxu0 %v1828
  %2870 = vmatpush.bf16.msra.mxu0 %v1826
  %2871 = vmatpush.bf16.msra.mxu0 %v1824
  %2872 = vmatpush.bf16.msra.mxu0 %v1822
  %2873 = vmatpush.bf16.msra.mxu0 %v1820
  %2874 = vmatpush.bf16.msra.mxu0 %v1818
  %2875 = vmatpush.bf16.msra.mxu0 %v1816
  %2876 = vmatmul.bf16.gmra.mxu0 %v480
  %v2877 = vpop.f32.mrf.mxu0
  %v2878 = vadd.f32 %v2865, %v2877
  %v2879 = vpop.f32.mrf.mxu0
  %2880 = vdwg.mxu0
  %2881 = vmatpush.bf16.msra.mxu0 %v1846
  %2882 = vmatpush.bf16.msra.mxu0 %v1844
  %2883 = vmatpush.bf16.msra.mxu0 %v1842
  %2884 = vmatpush.bf16.msra.mxu0 %v1840
  %2885 = vmatpush.bf16.msra.mxu0 %v1838
  %2886 = vmatpush.bf16.msra.mxu0 %v1836
  %2887 = vmatpush.bf16.msra.mxu0 %v1834
  %2888 = vmatpush.bf16.msra.mxu0 %v1832
  %2889 = vmatmul.bf16.gmra.mxu0 %v481
  %v2890 = vpop.f32.mrf.mxu0
  %v2891 = vadd.f32 %v2878, %v2890
  %v2892 = vpop.f32.mrf.mxu0
  %2893 = vdwg.mxu0
  %2894 = vmatpush.bf16.msra.mxu0 %v1862
  %2895 = vmatpush.bf16.msra.mxu0 %v1860
  %2896 = vmatpush.bf16.msra.mxu0 %v1858
  %2897 = vmatpush.bf16.msra.mxu0 %v1856
  %2898 = vmatpush.bf16.msra.mxu0 %v1854
  %2899 = vmatpush.bf16.msra.mxu0 %v1852
  %2900 = vmatpush.bf16.msra.mxu0 %v1850
  %2901 = vmatpush.bf16.msra.mxu0 %v1848
  %2902 = vmatmul.bf16.gmra.mxu0 %v482
  %v2903 = vpop.f32.mrf.mxu0
  %v2904 = vadd.f32 %v2891, %v2903
  %v2905 = vpop.f32.mrf.mxu0
  %2906 = vdwg.mxu0
  %2907 = vmatpush.bf16.msra.mxu0 %v1878
  %2908 = vmatpush.bf16.msra.mxu0 %v1876
  %2909 = vmatpush.bf16.msra.mxu0 %v1874
  %2910 = vmatpush.bf16.msra.mxu0 %v1872
  %2911 = vmatpush.bf16.msra.mxu0 %v1870
  %2912 = vmatpush.bf16.msra.mxu0 %v1868
  %2913 = vmatpush.bf16.msra.mxu0 %v1866
  %2914 = vmatpush.bf16.msra.mxu0 %v1864
  %2915 = vmatmul.bf16.gmra.mxu0 %v483
  %v2916 = vpop.f32.mrf.mxu0
  %v2917 = vadd.f32 %v2904, %v2916
  %v2918 = vpop.f32.mrf.mxu0
  %2919 = vdwg.mxu0
  %2920 = vmatpush.bf16.msra.mxu0 %v1894
  %2921 = vmatpush.bf16.msra.mxu0 %v1892
  %2922 = vmatpush.bf16.msra.mxu0 %v1890
  %2923 = vmatpush.bf16.msra.mxu0 %v1888
  %2924 = vmatpush.bf16.msra.mxu0 %v1886
  %2925 = vmatpush.bf16.msra.mxu0 %v1884
  %2926 = vmatpush.bf16.msra.mxu0 %v1882
  %2927 = vmatpush.bf16.msra.mxu0 %v1880
  %2928 = vmatmul.bf16.gmra.mxu0 %v484
  %v2929 = vpop.f32.mrf.mxu0
  %v2930 = vadd.f32 %v2917, %v2929
  %v2931 = vpop.f32.mrf.mxu0
  %2932 = vdwg.mxu0
  %2933 = vmatpush.bf16.msra.mxu0 %v1910
  %2934 = vmatpush.bf16.msra.mxu0 %v1908
  %2935 = vmatpush.bf16.msra.mxu0 %v1906
  %2936 = vmatpush.bf16.msra.mxu0 %v1904
  %2937 = vmatpush.bf16.msra.mxu0 %v1902
  %2938 = vmatpush.bf16.msra.mxu0 %v1900
  %2939 = vmatpush.bf16.msra.mxu0 %v1898
  %2940 = vmatpush.bf16.msra.mxu0 %v1896
  %2941 = vmatmul.bf16.gmra.mxu0 %v485
  %v2942 = vpop.f32.mrf.mxu0
  %v2943 = vadd.f32 %v2930, %v2942
  %v2944 = vpop.f32.mrf.mxu0
  %2945 = vdwg.mxu0
  %2946 = vmatpush.bf16.msra.mxu0 %v1926
  %2947 = vmatpush.bf16.msra.mxu0 %v1924
  %2948 = vmatpush.bf16.msra.mxu0 %v1922
  %2949 = vmatpush.bf16.msra.mxu0 %v1920
  %2950 = vmatpush.bf16.msra.mxu0 %v1918
  %2951 = vmatpush.bf16.msra.mxu0 %v1916
  %2952 = vmatpush.bf16.msra.mxu0 %v1914
  %2953 = vmatpush.bf16.msra.mxu0 %v1912
  %2954 = vmatmul.bf16.gmra.mxu0 %v486
  %v2955 = vpop.f32.mrf.mxu0
  %v2956 = vadd.f32 %v2943, %v2955
  %v2957 = vpop.f32.mrf.mxu0
  %2958 = vdwg.mxu0
  %2959 = vmatpush.bf16.msra.mxu0 %v1942
  %2960 = vmatpush.bf16.msra.mxu0 %v1940
  %2961 = vmatpush.bf16.msra.mxu0 %v1938
  %2962 = vmatpush.bf16.msra.mxu0 %v1936
  %2963 = vmatpush.bf16.msra.mxu0 %v1934
  %2964 = vmatpush.bf16.msra.mxu0 %v1932
  %2965 = vmatpush.bf16.msra.mxu0 %v1930
  %2966 = vmatpush.bf16.msra.mxu0 %v1928
  %2967 = vmatmul.bf16.gmra.mxu0 %v487
  %v2968 = vpop.f32.mrf.mxu0
  %v2969 = vadd.f32 %v2956, %v2968
  %v2970 = vpop.f32.mrf.mxu0
  %2971 = vdwg.mxu0
  %2972 = vmatpush.bf16.msra.mxu0 %v1958
  %2973 = vmatpush.bf16.msra.mxu0 %v1956
  %2974 = vmatpush.bf16.msra.mxu0 %v1954
  %2975 = vmatpush.bf16.msra.mxu0 %v1952
  %2976 = vmatpush.bf16.msra.mxu0 %v1950
  %2977 = vmatpush.bf16.msra.mxu0 %v1948
  %2978 = vmatpush.bf16.msra.mxu0 %v1946
  %2979 = vmatpush.bf16.msra.mxu0 %v1944
  %2980 = vmatmul.bf16.gmra.mxu0 %v488
  %v2981 = vpop.f32.mrf.mxu0
  %v2982 = vadd.f32 %v2969, %v2981
  %v2983 = vpop.f32.mrf.mxu0
  %2984 = vdwg.mxu0
  %2985 = vmatpush.bf16.msra.mxu0 %v1974
  %2986 = vmatpush.bf16.msra.mxu0 %v1972
  %2987 = vmatpush.bf16.msra.mxu0 %v1970
  %2988 = vmatpush.bf16.msra.mxu0 %v1968
  %2989 = vmatpush.bf16.msra.mxu0 %v1966
  %2990 = vmatpush.bf16.msra.mxu0 %v1964
  %2991 = vmatpush.bf16.msra.mxu0 %v1962
  %2992 = vmatpush.bf16.msra.mxu0 %v1960
  %2993 = vmatmul.bf16.gmra.mxu0 %v489
  %v2994 = vpop.f32.mrf.mxu0
  %v2995 = vadd.f32 %v2982, %v2994
  %v2996 = vpop.f32.mrf.mxu0
  %2997 = vdwg.mxu0
  %2998 = vmatpush.bf16.msra.mxu0 %v1990
  %2999 = vmatpush.bf16.msra.mxu0 %v1988
  %3000 = vmatpush.bf16.msra.mxu0 %v1986
  %3001 = vmatpush.bf16.msra.mxu0 %v1984
  %3002 = vmatpush.bf16.msra.mxu0 %v1982
  %3003 = vmatpush.bf16.msra.mxu0 %v1980
  %3004 = vmatpush.bf16.msra.mxu0 %v1978
  %3005 = vmatpush.bf16.msra.mxu0 %v1976
  %3006 = vmatmul.bf16.gmra.mxu0 %v490
  %v3007 = vpop.f32.mrf.mxu0
  %v3008 = vadd.f32 %v2995, %v3007
  %v3009 = vpop.f32.mrf.mxu0
  %3010 = vdwg.mxu0
  %3011 = vmatpush.bf16.msra.mxu0 %v2006
  %3012 = vmatpush.bf16.msra.mxu0 %v2004
  %3013 = vmatpush.bf16.msra.mxu0 %v2002
  %3014 = vmatpush.bf16.msra.mxu0 %v2000
  %3015 = vmatpush.bf16.msra.mxu0 %v1998
  %3016 = vmatpush.bf16.msra.mxu0 %v1996
  %3017 = vmatpush.bf16.msra.mxu0 %v1994
  %3018 = vmatpush.bf16.msra.mxu0 %v1992
  %3019 = vmatmul.bf16.gmra.mxu0 %v491
  %v3020 = vpop.f32.mrf.mxu0
  %v3021 = vadd.f32 %v3008, %v3020
  %v3022 = vpop.f32.mrf.mxu0
  %3023 = vdwg.mxu0
  %3024 = vmatpush.bf16.msra.mxu0 %v2022
  %3025 = vmatpush.bf16.msra.mxu0 %v2020
  %3026 = vmatpush.bf16.msra.mxu0 %v2018
  %3027 = vmatpush.bf16.msra.mxu0 %v2016
  %3028 = vmatpush.bf16.msra.mxu0 %v2014
  %3029 = vmatpush.bf16.msra.mxu0 %v2012
  %3030 = vmatpush.bf16.msra.mxu0 %v2010
  %3031 = vmatpush.bf16.msra.mxu0 %v2008
  %3032 = vmatmul.bf16.gmra.mxu0 %v492
  %v3033 = vpop.f32.mrf.mxu0
  %v3034 = vadd.f32 %v3021, %v3033
  %v3035 = vpop.f32.mrf.mxu0
  %3036 = vdwg.mxu0
  %3037 = vmatpush.bf16.msra.mxu0 %v2038
  %3038 = vmatpush.bf16.msra.mxu0 %v2036
  %3039 = vmatpush.bf16.msra.mxu0 %v2034
  %3040 = vmatpush.bf16.msra.mxu0 %v2032
  %3041 = vmatpush.bf16.msra.mxu0 %v2030
  %3042 = vmatpush.bf16.msra.mxu0 %v2028
  %3043 = vmatpush.bf16.msra.mxu0 %v2026
  %3044 = vmatpush.bf16.msra.mxu0 %v2024
  %3045 = vmatmul.bf16.gmra.mxu0 %v493
  %v3046 = vpop.f32.mrf.mxu0
  %v3047 = vadd.f32 %v3034, %v3046
  %v3048 = vpop.f32.mrf.mxu0
  %3049 = vdwg.mxu0
  %3050 = vmatpush.bf16.msra.mxu0 %v2054
  %3051 = vmatpush.bf16.msra.mxu0 %v2052
  %3052 = vmatpush.bf16.msra.mxu0 %v2050
  %3053 = vmatpush.bf16.msra.mxu0 %v2048
  %3054 = vmatpush.bf16.msra.mxu0 %v2046
  %3055 = vmatpush.bf16.msra.mxu0 %v2044
  %3056 = vmatpush.bf16.msra.mxu0 %v2042
  %3057 = vmatpush.bf16.msra.mxu0 %v2040
  %3058 = vmatmul.bf16.gmra.mxu0 %v494
  %v3059 = vpop.f32.mrf.mxu0
  %v3060 = vadd.f32 %v3047, %v3059
  %v3061 = vpop.f32.mrf.mxu0
  %3062 = vdwg.mxu0
  %vm3063 = vcmp.gt.f32.partialorder %v2748, 0.0
  %vm3064 = vcmp.gt.f32.partialorder %v3060, 0.0
  %v3065 = vmul.f32 %v2748, 0.2
  %v3066 = vmul.f32 %v3060, 0.2
  %v3067 = vsel %vm3063, %v2748, %v3065
  %v3068 = vsel %vm3064, %v3060, %v3066
  %v3069 = vpack.c.bf16 %v3067, %v3067
  %v3070 = vpack.c.bf16 %v3068, %v3068
  %v3071 = vld [vmem:[%s3] sm:$0xf]
  %v3072 = vld [vmem:[%s3 + $0x4] sm:$0xf]
  %v3073 = vld [vmem:[%s3 + $0x8] sm:$0xf]
  %v3074 = vld [vmem:[%s3 + $0xc] sm:$0xf]
  %v3075 = vld [vmem:[%s3 + $0x10] sm:$0xf]
  %v3076 = vld [vmem:[%s3 + $0x14] sm:$0xf]
  %v3077 = vld [vmem:[%s3 + $0x18] sm:$0xf]
  %v3078 = vld [vmem:[%s3 + $0x1c] sm:$0xf]
  %v3079 = vld [vmem:[%s3 + $0x20] sm:$0xf]
  %v3080 = vld [vmem:[%s3 + $0x24] sm:$0xf]
  %v3081 = vld [vmem:[%s3 + $0x28] sm:$0xf]
  %v3082 = vld [vmem:[%s3 + $0x2c] sm:$0xf]
  %v3083 = vld [vmem:[%s3 + $0x30] sm:$0xf]
  %v3084 = vld [vmem:[%s3 + $0x34] sm:$0xf]
  %v3085 = vld [vmem:[%s3 + $0x38] sm:$0xf]
  %v3086 = vld [vmem:[%s3 + $0x3c] sm:$0xf]
  %v3087 = vld [vmem:[%s3 + $0x40] sm:$0xf]
  %v3088 = vld [vmem:[%s3 + $0x44] sm:$0xf]
  %v3089 = vld [vmem:[%s3 + $0x48] sm:$0xf]
  %v3090 = vld [vmem:[%s3 + $0x4c] sm:$0xf]
  %v3091 = vld [vmem:[%s3 + $0x50] sm:$0xf]
  %v3092 = vld [vmem:[%s3 + $0x54] sm:$0xf]
  %v3093 = vld [vmem:[%s3 + $0x58] sm:$0xf]
  %v3094 = vld [vmem:[%s3 + $0x5c] sm:$0xf]
  %v3095 = vld [vmem:[%s3 + $0x60] sm:$0xf]
  %v3096 = vld [vmem:[%s3 + $0x64] sm:$0xf]
  %v3097 = vld [vmem:[%s3 + $0x68] sm:$0xf]
  %v3098 = vld [vmem:[%s3 + $0x6c] sm:$0xf]
  %v3099 = vld [vmem:[%s3 + $0x70] sm:$0xf]
  %v3100 = vld [vmem:[%s3 + $0x74] sm:$0xf]
  %v3101 = vld [vmem:[%s3 + $0x78] sm:$0xf]
  %v3102 = vld [vmem:[%s3 + $0x7c] sm:$0xf]
  %v3103 = vld [vmem:[%s4] sm:$0x1]
  %v3105 = vperm.slane %v3103, 0
  %v3139 = vunpack.c.l.b16 %v3071
  %v3140 = vunpack.c.l.b16 %v3072
  %v3141 = vunpack.c.l.b16 %v3073
  %v3142 = vunpack.c.l.b16 %v3074
  %v3143 = vunpack.c.l.b16 %v3075
  %v3144 = vunpack.c.l.b16 %v3076
  %v3145 = vunpack.c.l.b16 %v3077
  %v3146 = vunpack.c.l.b16 %v3078
  %v3147 = vunpack.c.l.b16 %v3079
  %v3148 = vunpack.c.l.b16 %v3080
  %v3149 = vunpack.c.l.b16 %v3081
  %v3150 = vunpack.c.l.b16 %v3082
  %v3151 = vunpack.c.l.b16 %v3083
  %v3152 = vunpack.c.l.b16 %v3084
  %v3153 = vunpack.c.l.b16 %v3085
  %v3154 = vunpack.c.l.b16 %v3086
  %v3155 = vunpack.c.l.b16 %v3087
  %v3156 = vunpack.c.l.b16 %v3088
  %v3157 = vunpack.c.l.b16 %v3089
  %v3158 = vunpack.c.l.b16 %v3090
  %v3159 = vunpack.c.l.b16 %v3091
  %v3160 = vunpack.c.l.b16 %v3092
  %v3161 = vunpack.c.l.b16 %v3093
  %v3162 = vunpack.c.l.b16 %v3094
  %v3163 = vunpack.c.l.b16 %v3095
  %v3164 = vunpack.c.l.b16 %v3096
  %v3165 = vunpack.c.l.b16 %v3097
  %v3166 = vunpack.c.l.b16 %v3098
  %v3167 = vunpack.c.l.b16 %v3099
  %v3168 = vunpack.c.l.b16 %v3100
  %v3169 = vunpack.c.l.b16 %v3101
  %v3170 = vunpack.c.l.b16 %v3102
  %v3171 = vpack.c.b16 %v3140, %v3139
  %v3172 = vpack.c.b16 %v3142, %v3141
  %v3173 = vpack.c.b16 %v3144, %v3143
  %v3174 = vpack.c.b16 %v3146, %v3145
  %v3175 = vpack.c.b16 %v3148, %v3147
  %v3176 = vpack.c.b16 %v3150, %v3149
  %v3177 = vpack.c.b16 %v3152, %v3151
  %v3178 = vpack.c.b16 %v3154, %v3153
  %v3179 = vpack.c.b16 %v3156, %v3155
  %v3180 = vpack.c.b16 %v3158, %v3157
  %v3181 = vpack.c.b16 %v3160, %v3159
  %v3182 = vpack.c.b16 %v3162, %v3161
  %v3183 = vpack.c.b16 %v3164, %v3163
  %v3184 = vpack.c.b16 %v3166, %v3165
  %v3185 = vpack.c.b16 %v3168, %v3167
  %v3186 = vpack.c.b16 %v3170, %v3169
  %3203 = vmatpush.bf16.msra.mxu0 %v3178
  %3204 = vmatpush.bf16.msra.mxu0 %v3177
  %3205 = vmatpush.bf16.msra.mxu0 %v3176
  %3206 = vmatpush.bf16.msra.mxu0 %v3175
  %3207 = vmatpush.bf16.msra.mxu0 %v3174
  %3208 = vmatpush.bf16.msra.mxu0 %v3173
  %3209 = vmatpush.bf16.msra.mxu0 %v3172
  %3210 = vmatpush.bf16.msra.mxu0 %v3171
  %3211 = vmatmul.bf16.gmra.mxu0 %v3069
  %v3212 = vpop.f32.mrf.mxu0
  %v3213 = vadd.f32 %v3105, %v3212
  %v3214 = vpop.f32.mrf.mxu0
  %3215 = vdwg.mxu0
  %3216 = vmatpush.bf16.msra.mxu0 %v3186
  %3217 = vmatpush.bf16.msra.mxu0 %v3185
  %3218 = vmatpush.bf16.msra.mxu0 %v3184
  %3219 = vmatpush.bf16.msra.mxu0 %v3183
  %3220 = vmatpush.bf16.msra.mxu0 %v3182
  %3221 = vmatpush.bf16.msra.mxu0 %v3181
  %3222 = vmatpush.bf16.msra.mxu0 %v3180
  %3223 = vmatpush.bf16.msra.mxu0 %v3179
  %3224 = vmatmul.bf16.gmra.mxu0 %v3070
  %v3225 = vpop.f32.mrf.mxu0
  %v3226 = vadd.f32 %v3213, %v3225
  %v3227 = vpop.f32.mrf.mxu0
  %3228 = vdwg.mxu0
  %vm3229 = vcmp.gt.f32.partialorder %v3226, 0.0
  %v3230 = vmul.f32 %v3226, 0.2
  %v3231 = vsel %vm3229, %v3226, %v3230
  %v3232 = vpack.c.bf16 %v3231, %v3231
  %v3233 = vld [vmem:[%s5] sm:$0xf]
  %v3234 = vld [vmem:[%s5 + $0x4] sm:$0xf]
  %v3235 = vld [vmem:[%s5 + $0x8] sm:$0xf]
  %v3236 = vld [vmem:[%s5 + $0xc] sm:$0xf]
  %v3237 = vld [vmem:[%s5 + $0x10] sm:$0xf]
  %v3238 = vld [vmem:[%s5 + $0x14] sm:$0xf]
  %v3239 = vld [vmem:[%s5 + $0x18] sm:$0xf]
  %v3240 = vld [vmem:[%s5 + $0x1c] sm:$0xf]
  %v3241 = vld [vmem:[%s5 + $0x20] sm:$0xf]
  %v3242 = vld [vmem:[%s5 + $0x24] sm:$0xf]
  %v3243 = vld [vmem:[%s5 + $0x28] sm:$0xf]
  %v3244 = vld [vmem:[%s5 + $0x2c] sm:$0xf]
  %v3245 = vld [vmem:[%s5 + $0x30] sm:$0xf]
  %v3246 = vld [vmem:[%s5 + $0x34] sm:$0xf]
  %v3247 = vld [vmem:[%s5 + $0x38] sm:$0xf]
  %v3248 = vld [vmem:[%s5 + $0x3c] sm:$0xf]
  %v3249 = vld [vmem:[%s6] sm:$0x1]
  %v3251 = vperm.slane %v3249, 0
  %v3269 = vunpack.c.l.b16 %v3233
  %v3270 = vunpack.c.l.b16 %v3234
  %v3271 = vunpack.c.l.b16 %v3235
  %v3272 = vunpack.c.l.b16 %v3236
  %v3273 = vunpack.c.l.b16 %v3237
  %v3274 = vunpack.c.l.b16 %v3238
  %v3275 = vunpack.c.l.b16 %v3239
  %v3276 = vunpack.c.l.b16 %v3240
  %v3277 = vunpack.c.l.b16 %v3241
  %v3278 = vunpack.c.l.b16 %v3242
  %v3279 = vunpack.c.l.b16 %v3243
  %v3280 = vunpack.c.l.b16 %v3244
  %v3281 = vunpack.c.l.b16 %v3245
  %v3282 = vunpack.c.l.b16 %v3246
  %v3283 = vunpack.c.l.b16 %v3247
  %v3284 = vunpack.c.l.b16 %v3248
  %v3285 = vpack.c.b16 %v3270, %v3269
  %v3286 = vpack.c.b16 %v3272, %v3271
  %v3287 = vpack.c.b16 %v3274, %v3273
  %v3288 = vpack.c.b16 %v3276, %v3275
  %v3289 = vpack.c.b16 %v3278, %v3277
  %v3290 = vpack.c.b16 %v3280, %v3279
  %v3291 = vpack.c.b16 %v3282, %v3281
  %v3292 = vpack.c.b16 %v3284, %v3283
  %3301 = vmatpush.bf16.msra.mxu0 %v3292
  %3302 = vmatpush.bf16.msra.mxu0 %v3291
  %3303 = vmatpush.bf16.msra.mxu0 %v3290
  %3304 = vmatpush.bf16.msra.mxu0 %v3289
  %3305 = vmatpush.bf16.msra.mxu0 %v3288
  %3306 = vmatpush.bf16.msra.mxu0 %v3287
  %3307 = vmatpush.bf16.msra.mxu0 %v3286
  %3308 = vmatpush.bf16.msra.mxu0 %v3285
  %3309 = vmatmul.bf16.gmra.mxu0 %v3232
  %v3310 = vpop.f32.mrf.mxu0
  %v3311 = vadd.f32 %v3251, %v3310
  %v3312 = vpop.f32.mrf.mxu0
  %3313 = vdwg.mxu0
  %vm3314 = vcmp.gt.f32.partialorder %v3311, 0.0
  %v3315 = vmul.f32 %v3311, 0.2
  %v3316 = vsel %vm3314, %v3311, %v3315
  %v3317 = vpack.c.bf16 %v3316, %v3316
  %v3318 = vld [vmem:[%s7] sm:$0xf]
  %v3319 = vld [vmem:[%s7 + $0x4] sm:$0xf]
  %v3320 = vld [vmem:[%s7 + $0x8] sm:$0xf]
  %v3321 = vld [vmem:[%s7 + $0xc] sm:$0xf]
  %v3322 = vld [vmem:[%s7 + $0x10] sm:$0xf]
  %v3323 = vld [vmem:[%s7 + $0x14] sm:$0xf]
  %v3324 = vld [vmem:[%s7 + $0x18] sm:$0xf]
  %v3325 = vld [vmem:[%s7 + $0x1c] sm:$0xf]
  %v3326 = vld [vmem:[%s8] sm:$0x1]
  %v3328 = vperm.slane %v3326, 0
  %v3338 = vunpack.c.l.b16 %v3318
  %v3339 = vunpack.c.l.b16 %v3319
  %v3340 = vunpack.c.l.b16 %v3320
  %v3341 = vunpack.c.l.b16 %v3321
  %v3342 = vunpack.c.l.b16 %v3322
  %v3343 = vunpack.c.l.b16 %v3323
  %v3344 = vunpack.c.l.b16 %v3324
  %v3345 = vunpack.c.l.b16 %v3325
  %v3346 = vpack.c.b16 %v3339, %v3338
  %v3347 = vpack.c.b16 %v3341, %v3340
  %v3348 = vpack.c.b16 %v3343, %v3342
  %v3349 = vpack.c.b16 %v3345, %v3344
  %vm3354 = vcmask 523264
  %v3356 = vsel %vm3354, %v3317, 0
  %3358 = vmatpush.bf16.msra.mxu0 0
  %3359 = vmatpush.bf16.msra.mxu0 0
  %3360 = vmatpush.bf16.msra.mxu0 0
  %3361 = vmatpush.bf16.msra.mxu0 0
  %3362 = vmatpush.bf16.msra.mxu0 %v3349
  %3363 = vmatpush.bf16.msra.mxu0 %v3348
  %3364 = vmatpush.bf16.msra.mxu0 %v3347
  %3365 = vmatpush.bf16.msra.mxu0 %v3346
  %3366 = vmatmul.bf16.gmra.mxu0 %v3356
  %v3367 = vpop.f32.mrf.mxu0
  %v3368 = vadd.f32 %v3328, %v3367
  %v3369 = vpop.f32.mrf.mxu0
  %3370 = vdwg.mxu0
  %v3371 = vxor.u32 %v3368, 2147483648
  %v3372 = vmul.f32 %v3371, 1.442695
  %v3373 = vpow.pop %v3372
  %v3374 = vadd.f32 %v3373, 1.0
  %v3375 = vrcp.pop %v3374
  %v3376 = vmul.f32 %v3374, %v3375
  %v3377 = vsub.f32 1.0, %v3376
  %v3378 = vmul.f32 %v3375, %v3377
  %v3379 = vadd.f32 %v3375, %v3378
  %vm3380 = vweird.f32 %v3374
  %vm3381 = vweird.f32 %v3375
  %vm3382 = vmor %vm3380, %vm3381
  %v3383 = vsel %vm3382, %v3375, %v3379
  %v3384 = vand.u32 2147483647, %v3374
  %vm3385 = vcmp.eq.f32.partialorder %v3384, 8.507059e+37
  %v3386 = vand.u32 %v3374, 2147483648
  %v3387 = vor.u32 1.1754944e-38, %v3386
  %v3388 = vsel %vm3385, %v3387, %v3383
  %v3389 = vmul.f32 1.0, %v3388
  %3390 = vst [vmem:[%s9] sm:$0xff] %v3389
  // Predicated region
  $region38: #{interesting_gan_discriminator.1} parent=0 // pred_check
    _
  $region39: #{interesting_gan_discriminator.1} parent=0 // pred_check_branch
    %3392 = sbr.rel (0) target = $region41
  $region40: #{interesting_gan_discriminator.1} parent=0 // pred_region
    _
  $region41: #{interesting_gan_discriminator.1} parent=0 // pred_fallthru
    _
  // Predicated region
  $region42: #{interesting_gan_discriminator.1} parent=0 // pred_check
    _
  $region43: #{interesting_gan_discriminator.1} parent=0 // pred_check_branch
    %3394 = sbr.rel (0) target = $region45
  $region44: #{interesting_gan_discriminator.1} parent=0 // pred_region
    _
  $region45: #{interesting_gan_discriminator.1} parent=0 // pred_fallthru
    _

</llo_original>
